<compile_context>
chip_gen: v5e
topology: v5e:2x2
jax: 0.10.0
libtpu: 0.0.40
codegen_flags: <defaults>
</compile_context>

<pallas_src>
import functools

import jax
import jax.numpy as jnp
from jax.experimental import pallas as pl
from jax.experimental.pallas import tpu as pltpu


# ----------------------------- Fused LSTM + FC kernel ------------------------
def make_lstm_network_kernel(num_layers, t_eff, batch, hidden):
    """Fused kernel: `num_layers` LSTM layers over t_eff steps + fc head.

    Positional refs:
      refs[0]                  x2d    (t_eff*B, E)   time-major flattened embeddings
      refs[1+3l .. 3+3l]       w_ih_t (D_l, 4H), w_hh_t (H, 4H), bias (1, 4H)
      refs[1+3L], refs[2+3L]   fc_w_t (H, O), fc_b (1, O)
      refs[3+3L]               out    (1, O)
    """
    B, H = batch, hidden

    def kernel(*refs):
        fcw_ref = refs[1 + 3 * num_layers]
        fcb_ref = refs[2 + 3 * num_layers]
        out_ref = refs[3 + 3 * num_layers]

        h = None
        prev_hs = None
        for l in range(num_layers):
            wih = refs[1 + 3 * l][...]          # (D_l, 4H)
            whh = refs[2 + 3 * l][...]          # (H, 4H)
            b = refs[3 + 3 * l][...]            # (1, 4H) = b_ih + b_hh

            # ---- hoisted input projection (independent of the recurrence) ----
            if l == 0:
                x2d = refs[0][...].astype(jnp.float32)           # (t_eff*B, E)
                xg = jnp.dot(x2d, wih, preferred_element_type=jnp.float32) + b
                xg_list = [xg[t * B:(t + 1) * B, :] for t in range(t_eff)]
            else:
                xg_list = [
                    jnp.dot(prev_hs[t], wih, preferred_element_type=jnp.float32) + b
                    for t in range(t_eff)
                ]

            # ---- serial recurrence: only h @ W_hh + gate math per step ----
            last_layer = l == num_layers - 1
            h = jnp.zeros((B, H), jnp.float32)
            c = jnp.zeros((B, H), jnp.float32)
            hs = []
            for t in range(t_eff):                # short static trip count, unrolled
                gates = xg_list[t] + jnp.dot(
                    h, whh, preferred_element_type=jnp.float32)   # (B, 4H)
                i = jax.nn.sigmoid(gates[:, 0 * H:1 * H])
                f = jax.nn.sigmoid(gates[:, 1 * H:2 * H])
                g = jnp.tanh(gates[:, 2 * H:3 * H])
                o = jax.nn.sigmoid(gates[:, 3 * H:4 * H])
                c = f * c + i * g
                h = o * jnp.tanh(c)
                if not last_layer:
                    hs.append(h)
            prev_hs = hs

        # TODO(synk): nn.Dropout is stochastic in train mode; eval-mode identity here.
        # out[:, last_pad, :][0]  ==  top-layer h at step t_eff-1, batch row 0.
        logits = (jnp.dot(h[0:1, :], fcw_ref[...],
                          preferred_element_type=jnp.float32) + fcb_ref[...])
        out_ref[...] = logits.astype(out_ref.dtype)

    return kernel


# ----------------------------- Parameter init --------------------------------
def init_params(key, vocab, embed_dim, hidden_size, num_layers, output_size):
    params = {}
    k_emb, key = jax.random.split(key)
    emb = jax.random.normal(k_emb, (vocab, embed_dim), jnp.float32)
    emb = emb.at[ord("\n")].set(0.0)  # padding_idx row zeroed, like nn.Embedding
    params["embedding"] = emb

    bound = 1.0 / jnp.sqrt(hidden_size)
    layers = []
    for l in range(num_layers):
        in_dim = embed_dim if l == 0 else hidden_size
        ks = jax.random.split(key, 5)
        key = ks[0]
        w_ih = jax.random.uniform(ks[1], (4 * hidden_size, in_dim), jnp.float32, -bound, bound)
        w_hh = jax.random.uniform(ks[2], (4 * hidden_size, hidden_size), jnp.float32, -bound, bound)
        b_ih = jax.random.uniform(ks[3], (4 * hidden_size,), jnp.float32, -bound, bound)
        b_hh = jax.random.uniform(ks[4], (4 * hidden_size,), jnp.float32, -bound, bound)
        layers.append(
            {
                "w_ih_t": jnp.transpose(w_ih),                        # (in, 4H)
                "w_hh_t": jnp.transpose(w_hh),                        # (H, 4H)
                "bias": (b_ih + b_hh).reshape(1, 4 * hidden_size),    # (1, 4H)
            }
        )
    params["lstm"] = layers

    kf1, kf2 = jax.random.split(key)
    fbound = 1.0 / jnp.sqrt(hidden_size)
    params["fc_w_t"] = jax.random.uniform(kf1, (hidden_size, output_size), jnp.float32, -fbound, fbound)
    params["fc_b"] = jax.random.uniform(kf2, (1, output_size), jnp.float32, -fbound, fbound)
    return params


# ----------------------------- Forward pass -----------------------------------
def lstm_network_forward(params, x_tokens, last_pad):
    """x_tokens: (B, T) int32, last_pad: static int time index. Returns (output_size,)."""
    B, T = x_tokens.shape
    t_eff = int(last_pad) + 1   # causal: steps > last_pad cannot affect the selected output
    H = params["lstm"][0]["w_hh_t"].shape[0]
    O = params["fc_w_t"].shape[1]

    # Embedding gather kept as plain-JAX glue (data-dependent gather).
    emb = jnp.take(params["embedding"], x_tokens[:, :t_eff], axis=0)        # (B, t_eff, E)
    # Time-major, flattened so layer 0's input projection is ONE matmul in-kernel.
    x2d = jnp.transpose(emb, (1, 0, 2)).reshape(t_eff * B, -1).astype(jnp.float32)

    inputs = [x2d]
    for layer in params["lstm"]:
        inputs += [layer["w_ih_t"], layer["w_hh_t"], layer["bias"]]
    inputs += [params["fc_w_t"], params["fc_b"]]

    vmem_spec = pl.BlockSpec(memory_space=pltpu.MemorySpace.VMEM)   # whole array, VMEM-resident
    kernel = make_lstm_network_kernel(len(params["lstm"]), t_eff, B, H)
    logits = pl.pallas_call(
        kernel,
        out_shape=jax.ShapeDtypeStruct((1, O), jnp.float32),
        in_specs=[vmem_spec] * len(inputs),
        out_specs=vmem_spec,
    )(*inputs)
    return logits[0]  # (output_size,)


# ----------------------------- Demo -------------------------------------------
if __name__ == "__main__":
    B, T = 2, 8
    EMBED_DIM = 16
    HIDDEN = 32
    NUM_LAYERS = 2
    OUTPUT = 10
    LAST_PAD = 5

    key = jax.random.PRNGKey(0)
    k_tok, k_par = jax.random.split(key)
    x_tokens = jax.random.randint(k_tok, (B, T), 0, 255, dtype=jnp.int32)
    params = init_params(k_par, 255, EMBED_DIM, HIDDEN, NUM_LAYERS, OUTPUT)

    fwd = jax.jit(functools.partial(lstm_network_forward, last_pad=LAST_PAD))
    out = fwd(params, x_tokens)
    jax.block_until_ready(out)
    assert out.shape == (OUTPUT,)
    print("KERNEL_OK")
</pallas_src>

<mosaic_0001>
module attributes {stable_mosaic.version = 11 : i64} {
  func.func @kernel(%arg0: memref<12x16xf32, #tpu.memory_space<vmem>>, %arg1: memref<16x128xf32, #tpu.memory_space<vmem>>, %arg2: memref<32x128xf32, #tpu.memory_space<vmem>>, %arg3: memref<1x128xf32, #tpu.memory_space<vmem>>, %arg4: memref<32x128xf32, #tpu.memory_space<vmem>>, %arg5: memref<32x128xf32, #tpu.memory_space<vmem>>, %arg6: memref<1x128xf32, #tpu.memory_space<vmem>>, %arg7: memref<32x10xf32, #tpu.memory_space<vmem>>, %arg8: memref<1x10xf32, #tpu.memory_space<vmem>>, %arg9: memref<1x10xf32, #tpu.memory_space<vmem>>) attributes {dimension_semantics = [], scalar_prefetch = 0 : i64, scratch_operands = 0 : i64, tpu.core_type = #tpu.core_type<tc>} {
    %c0 = arith.constant 0 : index
    %c0_0 = arith.constant 0 : index
    %0 = vector.load %arg1[%c0, %c0_0] : memref<16x128xf32, #tpu.memory_space<vmem>>, vector<16x128xf32>
    %c0_1 = arith.constant 0 : index
    %c0_2 = arith.constant 0 : index
    %1 = vector.load %arg2[%c0_1, %c0_2] : memref<32x128xf32, #tpu.memory_space<vmem>>, vector<32x128xf32>
    %c0_3 = arith.constant 0 : index
    %c0_4 = arith.constant 0 : index
    %2 = vector.load %arg3[%c0_3, %c0_4] : memref<1x128xf32, #tpu.memory_space<vmem>>, vector<1x128xf32>
    %c0_5 = arith.constant 0 : index
    %c0_6 = arith.constant 0 : index
    %3 = vector.load %arg0[%c0_5, %c0_6] : memref<12x16xf32, #tpu.memory_space<vmem>>, vector<12x16xf32>
    %cst = arith.constant dense<0.000000e+00> : vector<12x128xf32>
    %4 = tpu.matmul %3, %0, %cst {dimension_numbers = #tpu.dot_dimension_numbers<[1], [0], [0], [1], [0, 0, 1, 1], [], []>} : vector<12x16xf32>, vector<16x128xf32>, vector<12x128xf32> -> vector<12x128xf32>
    %5 = vector.broadcast %2 : vector<1x128xf32> to vector<12x128xf32>
    %6 = arith.addf %4, %5 : vector<12x128xf32>
    %7 = vector.extract_strided_slice %6 {offsets = [0, 0], sizes = [2, 128], strides = [1, 1]} : vector<12x128xf32> to vector<2x128xf32>
    %8 = vector.extract_strided_slice %6 {offsets = [2, 0], sizes = [2, 128], strides = [1, 1]} : vector<12x128xf32> to vector<2x128xf32>
    %9 = vector.extract_strided_slice %6 {offsets = [4, 0], sizes = [2, 128], strides = [1, 1]} : vector<12x128xf32> to vector<2x128xf32>
    %10 = vector.extract_strided_slice %6 {offsets = [6, 0], sizes = [2, 128], strides = [1, 1]} : vector<12x128xf32> to vector<2x128xf32>
    %11 = vector.extract_strided_slice %6 {offsets = [8, 0], sizes = [2, 128], strides = [1, 1]} : vector<12x128xf32> to vector<2x128xf32>
    %12 = vector.extract_strided_slice %6 {offsets = [10, 0], sizes = [2, 128], strides = [1, 1]} : vector<12x128xf32> to vector<2x128xf32>
    %cst_7 = arith.constant 0.000000e+00 : f32
    %13 = vector.broadcast %cst_7 : f32 to vector<2x32xf32>
    %cst_8 = arith.constant 0.000000e+00 : f32
    %14 = vector.broadcast %cst_8 : f32 to vector<2x32xf32>
    %cst_9 = arith.constant dense<0.000000e+00> : vector<2x128xf32>
    %15 = tpu.matmul %13, %1, %cst_9 {dimension_numbers = #tpu.dot_dimension_numbers<[1], [0], [0], [1], [0, 0, 1, 1], [], []>} : vector<2x32xf32>, vector<32x128xf32>, vector<2x128xf32> -> vector<2x128xf32>
    %16 = arith.addf %7, %15 : vector<2x128xf32>
    %17 = vector.extract_strided_slice %16 {offsets = [0, 0], sizes = [2, 32], strides = [1, 1]} : vector<2x128xf32> to vector<2x32xf32>
    %18 = arith.negf %17 : vector<2x32xf32>
    %19 = math.exp %18 : vector<2x32xf32>
    %cst_10 = arith.constant 1.000000e+00 : f32
    %20 = vector.broadcast %cst_10 : f32 to vector<2x32xf32>
    %21 = arith.addf %20, %19 : vector<2x32xf32>
    %22 = arith.divf %20, %21 : vector<2x32xf32>
    %23 = vector.extract_strided_slice %16 {offsets = [0, 32], sizes = [2, 32], strides = [1, 1]} : vector<2x128xf32> to vector<2x32xf32>
    %24 = arith.negf %23 : vector<2x32xf32>
    %25 = math.exp %24 : vector<2x32xf32>
    %cst_11 = arith.constant 1.000000e+00 : f32
    %26 = vector.broadcast %cst_11 : f32 to vector<2x32xf32>
    %27 = arith.addf %26, %25 : vector<2x32xf32>
    %28 = arith.divf %26, %27 : vector<2x32xf32>
    %29 = vector.extract_strided_slice %16 {offsets = [0, 64], sizes = [2, 32], strides = [1, 1]} : vector<2x128xf32> to vector<2x32xf32>
    %30 = math.tanh %29 : vector<2x32xf32>
    %31 = vector.extract_strided_slice %16 {offsets = [0, 96], sizes = [2, 32], strides = [1, 1]} : vector<2x128xf32> to vector<2x32xf32>
    %32 = arith.negf %31 : vector<2x32xf32>
    %33 = math.exp %32 : vector<2x32xf32>
    %cst_12 = arith.constant 1.000000e+00 : f32
    %34 = vector.broadcast %cst_12 : f32 to vector<2x32xf32>
    %35 = arith.addf %34, %33 : vector<2x32xf32>
    %36 = arith.divf %34, %35 : vector<2x32xf32>
    %37 = arith.mulf %28, %14 : vector<2x32xf32>
    %38 = arith.mulf %22, %30 : vector<2x32xf32>
    %39 = arith.addf %37, %38 : vector<2x32xf32>
    %40 = math.tanh %39 : vector<2x32xf32>
    %41 = arith.mulf %36, %40 : vector<2x32xf32>
    %cst_13 = arith.constant dense<0.000000e+00> : vector<2x128xf32>
    %42 = tpu.matmul %41, %1, %cst_13 {dimension_numbers = #tpu.dot_dimension_numbers<[1], [0], [0], [1], [0, 0, 1, 1], [], []>} : vector<2x32xf32>, vector<32x128xf32>, vector<2x128xf32> -> vector<2x128xf32>
    %43 = arith.addf %8, %42 : vector<2x128xf32>
    %44 = vector.extract_strided_slice %43 {offsets = [0, 0], sizes = [2, 32], strides = [1, 1]} : vector<2x128xf32> to vector<2x32xf32>
    %45 = arith.negf %44 : vector<2x32xf32>
    %46 = math.exp %45 : vector<2x32xf32>
    %cst_14 = arith.constant 1.000000e+00 : f32
    %47 = vector.broadcast %cst_14 : f32 to vector<2x32xf32>
    %48 = arith.addf %47, %46 : vector<2x32xf32>
    %49 = arith.divf %47, %48 : vector<2x32xf32>
    %50 = vector.extract_strided_slice %43 {offsets = [0, 32], sizes = [2, 32], strides = [1, 1]} : vector<2x128xf32> to vector<2x32xf32>
    %51 = arith.negf %50 : vector<2x32xf32>
    %52 = math.exp %51 : vector<2x32xf32>
    %cst_15 = arith.constant 1.000000e+00 : f32
    %53 = vector.broadcast %cst_15 : f32 to vector<2x32xf32>
    %54 = arith.addf %53, %52 : vector<2x32xf32>
    %55 = arith.divf %53, %54 : vector<2x32xf32>
    %56 = vector.extract_strided_slice %43 {offsets = [0, 64], sizes = [2, 32], strides = [1, 1]} : vector<2x128xf32> to vector<2x32xf32>
    %57 = math.tanh %56 : vector<2x32xf32>
    %58 = vector.extract_strided_slice %43 {offsets = [0, 96], sizes = [2, 32], strides = [1, 1]} : vector<2x128xf32> to vector<2x32xf32>
    %59 = arith.negf %58 : vector<2x32xf32>
    %60 = math.exp %59 : vector<2x32xf32>
    %cst_16 = arith.constant 1.000000e+00 : f32
    %61 = vector.broadcast %cst_16 : f32 to vector<2x32xf32>
    %62 = arith.addf %61, %60 : vector<2x32xf32>
    %63 = arith.divf %61, %62 : vector<2x32xf32>
    %64 = arith.mulf %55, %39 : vector<2x32xf32>
    %65 = arith.mulf %49, %57 : vector<2x32xf32>
    %66 = arith.addf %64, %65 : vector<2x32xf32>
    %67 = math.tanh %66 : vector<2x32xf32>
    %68 = arith.mulf %63, %67 : vector<2x32xf32>
    %cst_17 = arith.constant dense<0.000000e+00> : vector<2x128xf32>
    %69 = tpu.matmul %68, %1, %cst_17 {dimension_numbers = #tpu.dot_dimension_numbers<[1], [0], [0], [1], [0, 0, 1, 1], [], []>} : vector<2x32xf32>, vector<32x128xf32>, vector<2x128xf32> -> vector<2x128xf32>
    %70 = arith.addf %9, %69 : vector<2x128xf32>
    %71 = vector.extract_strided_slice %70 {offsets = [0, 0], sizes = [2, 32], strides = [1, 1]} : vector<2x128xf32> to vector<2x32xf32>
    %72 = arith.negf %71 : vector<2x32xf32>
    %73 = math.exp %72 : vector<2x32xf32>
    %cst_18 = arith.constant 1.000000e+00 : f32
    %74 = vector.broadcast %cst_18 : f32 to vector<2x32xf32>
    %75 = arith.addf %74, %73 : vector<2x32xf32>
    %76 = arith.divf %74, %75 : vector<2x32xf32>
    %77 = vector.extract_strided_slice %70 {offsets = [0, 32], sizes = [2, 32], strides = [1, 1]} : vector<2x128xf32> to vector<2x32xf32>
    %78 = arith.negf %77 : vector<2x32xf32>
    %79 = math.exp %78 : vector<2x32xf32>
    %cst_19 = arith.constant 1.000000e+00 : f32
    %80 = vector.broadcast %cst_19 : f32 to vector<2x32xf32>
    %81 = arith.addf %80, %79 : vector<2x32xf32>
    %82 = arith.divf %80, %81 : vector<2x32xf32>
    %83 = vector.extract_strided_slice %70 {offsets = [0, 64], sizes = [2, 32], strides = [1, 1]} : vector<2x128xf32> to vector<2x32xf32>
    %84 = math.tanh %83 : vector<2x32xf32>
    %85 = vector.extract_strided_slice %70 {offsets = [0, 96], sizes = [2, 32], strides = [1, 1]} : vector<2x128xf32> to vector<2x32xf32>
    %86 = arith.negf %85 : vector<2x32xf32>
    %87 = math.exp %86 : vector<2x32xf32>
    %cst_20 = arith.constant 1.000000e+00 : f32
    %88 = vector.broadcast %cst_20 : f32 to vector<2x32xf32>
    %89 = arith.addf %88, %87 : vector<2x32xf32>
    %90 = arith.divf %88, %89 : vector<2x32xf32>
    %91 = arith.mulf %82, %66 : vector<2x32xf32>
    %92 = arith.mulf %76, %84 : vector<2x32xf32>
    %93 = arith.addf %91, %92 : vector<2x32xf32>
    %94 = math.tanh %93 : vector<2x32xf32>
    %95 = arith.mulf %90, %94 : vector<2x32xf32>
    %cst_21 = arith.constant dense<0.000000e+00> : vector<2x128xf32>
    %96 = tpu.matmul %95, %1, %cst_21 {dimension_numbers = #tpu.dot_dimension_numbers<[1], [0], [0], [1], [0, 0, 1, 1], [], []>} : vector<2x32xf32>, vector<32x128xf32>, vector<2x128xf32> -> vector<2x128xf32>
    %97 = arith.addf %10, %96 : vector<2x128xf32>
    %98 = vector.extract_strided_slice %97 {offsets = [0, 0], sizes = [2, 32], strides = [1, 1]} : vector<2x128xf32> to vector<2x32xf32>
    %99 = arith.negf %98 : vector<2x32xf32>
    %100 = math.exp %99 : vector<2x32xf32>
    %cst_22 = arith.constant 1.000000e+00 : f32
    %101 = vector.broadcast %cst_22 : f32 to vector<2x32xf32>
    %102 = arith.addf %101, %100 : vector<2x32xf32>
    %103 = arith.divf %101, %102 : vector<2x32xf32>
    %104 = vector.extract_strided_slice %97 {offsets = [0, 32], sizes = [2, 32], strides = [1, 1]} : vector<2x128xf32> to vector<2x32xf32>
    %105 = arith.negf %104 : vector<2x32xf32>
    %106 = math.exp %105 : vector<2x32xf32>
    %cst_23 = arith.constant 1.000000e+00 : f32
    %107 = vector.broadcast %cst_23 : f32 to vector<2x32xf32>
    %108 = arith.addf %107, %106 : vector<2x32xf32>
    %109 = arith.divf %107, %108 : vector<2x32xf32>
    %110 = vector.extract_strided_slice %97 {offsets = [0, 64], sizes = [2, 32], strides = [1, 1]} : vector<2x128xf32> to vector<2x32xf32>
    %111 = math.tanh %110 : vector<2x32xf32>
    %112 = vector.extract_strided_slice %97 {offsets = [0, 96], sizes = [2, 32], strides = [1, 1]} : vector<2x128xf32> to vector<2x32xf32>
    %113 = arith.negf %112 : vector<2x32xf32>
    %114 = math.exp %113 : vector<2x32xf32>
    %cst_24 = arith.constant 1.000000e+00 : f32
    %115 = vector.broadcast %cst_24 : f32 to vector<2x32xf32>
    %116 = arith.addf %115, %114 : vector<2x32xf32>
    %117 = arith.divf %115, %116 : vector<2x32xf32>
    %118 = arith.mulf %109, %93 : vector<2x32xf32>
    %119 = arith.mulf %103, %111 : vector<2x32xf32>
    %120 = arith.addf %118, %119 : vector<2x32xf32>
    %121 = math.tanh %120 : vector<2x32xf32>
    %122 = arith.mulf %117, %121 : vector<2x32xf32>
    %cst_25 = arith.constant dense<0.000000e+00> : vector<2x128xf32>
    %123 = tpu.matmul %122, %1, %cst_25 {dimension_numbers = #tpu.dot_dimension_numbers<[1], [0], [0], [1], [0, 0, 1, 1], [], []>} : vector<2x32xf32>, vector<32x128xf32>, vector<2x128xf32> -> vector<2x128xf32>
    %124 = arith.addf %11, %123 : vector<2x128xf32>
    %125 = vector.extract_strided_slice %124 {offsets = [0, 0], sizes = [2, 32], strides = [1, 1]} : vector<2x128xf32> to vector<2x32xf32>
    %126 = arith.negf %125 : vector<2x32xf32>
    %127 = math.exp %126 : vector<2x32xf32>
    %cst_26 = arith.constant 1.000000e+00 : f32
    %128 = vector.broadcast %cst_26 : f32 to vector<2x32xf32>
    %129 = arith.addf %128, %127 : vector<2x32xf32>
    %130 = arith.divf %128, %129 : vector<2x32xf32>
    %131 = vector.extract_strided_slice %124 {offsets = [0, 32], sizes = [2, 32], strides = [1, 1]} : vector<2x128xf32> to vector<2x32xf32>
    %132 = arith.negf %131 : vector<2x32xf32>
    %133 = math.exp %132 : vector<2x32xf32>
    %cst_27 = arith.constant 1.000000e+00 : f32
    %134 = vector.broadcast %cst_27 : f32 to vector<2x32xf32>
    %135 = arith.addf %134, %133 : vector<2x32xf32>
    %136 = arith.divf %134, %135 : vector<2x32xf32>
    %137 = vector.extract_strided_slice %124 {offsets = [0, 64], sizes = [2, 32], strides = [1, 1]} : vector<2x128xf32> to vector<2x32xf32>
    %138 = math.tanh %137 : vector<2x32xf32>
    %139 = vector.extract_strided_slice %124 {offsets = [0, 96], sizes = [2, 32], strides = [1, 1]} : vector<2x128xf32> to vector<2x32xf32>
    %140 = arith.negf %139 : vector<2x32xf32>
    %141 = math.exp %140 : vector<2x32xf32>
    %cst_28 = arith.constant 1.000000e+00 : f32
    %142 = vector.broadcast %cst_28 : f32 to vector<2x32xf32>
    %143 = arith.addf %142, %141 : vector<2x32xf32>
    %144 = arith.divf %142, %143 : vector<2x32xf32>
    %145 = arith.mulf %136, %120 : vector<2x32xf32>
    %146 = arith.mulf %130, %138 : vector<2x32xf32>
    %147 = arith.addf %145, %146 : vector<2x32xf32>
    %148 = math.tanh %147 : vector<2x32xf32>
    %149 = arith.mulf %144, %148 : vector<2x32xf32>
    %cst_29 = arith.constant dense<0.000000e+00> : vector<2x128xf32>
    %150 = tpu.matmul %149, %1, %cst_29 {dimension_numbers = #tpu.dot_dimension_numbers<[1], [0], [0], [1], [0, 0, 1, 1], [], []>} : vector<2x32xf32>, vector<32x128xf32>, vector<2x128xf32> -> vector<2x128xf32>
    %151 = arith.addf %12, %150 : vector<2x128xf32>
    %152 = vector.extract_strided_slice %151 {offsets = [0, 0], sizes = [2, 32], strides = [1, 1]} : vector<2x128xf32> to vector<2x32xf32>
    %153 = arith.negf %152 : vector<2x32xf32>
    %154 = math.exp %153 : vector<2x32xf32>
    %cst_30 = arith.constant 1.000000e+00 : f32
    %155 = vector.broadcast %cst_30 : f32 to vector<2x32xf32>
    %156 = arith.addf %155, %154 : vector<2x32xf32>
    %157 = arith.divf %155, %156 : vector<2x32xf32>
    %158 = vector.extract_strided_slice %151 {offsets = [0, 32], sizes = [2, 32], strides = [1, 1]} : vector<2x128xf32> to vector<2x32xf32>
    %159 = arith.negf %158 : vector<2x32xf32>
    %160 = math.exp %159 : vector<2x32xf32>
    %cst_31 = arith.constant 1.000000e+00 : f32
    %161 = vector.broadcast %cst_31 : f32 to vector<2x32xf32>
    %162 = arith.addf %161, %160 : vector<2x32xf32>
    %163 = arith.divf %161, %162 : vector<2x32xf32>
    %164 = vector.extract_strided_slice %151 {offsets = [0, 64], sizes = [2, 32], strides = [1, 1]} : vector<2x128xf32> to vector<2x32xf32>
    %165 = math.tanh %164 : vector<2x32xf32>
    %166 = vector.extract_strided_slice %151 {offsets = [0, 96], sizes = [2, 32], strides = [1, 1]} : vector<2x128xf32> to vector<2x32xf32>
    %167 = arith.negf %166 : vector<2x32xf32>
    %168 = math.exp %167 : vector<2x32xf32>
    %cst_32 = arith.constant 1.000000e+00 : f32
    %169 = vector.broadcast %cst_32 : f32 to vector<2x32xf32>
    %170 = arith.addf %169, %168 : vector<2x32xf32>
    %171 = arith.divf %169, %170 : vector<2x32xf32>
    %172 = arith.mulf %163, %147 : vector<2x32xf32>
    %173 = arith.mulf %157, %165 : vector<2x32xf32>
    %174 = arith.addf %172, %173 : vector<2x32xf32>
    %175 = math.tanh %174 : vector<2x32xf32>
    %176 = arith.mulf %171, %175 : vector<2x32xf32>
    %c0_33 = arith.constant 0 : index
    %c0_34 = arith.constant 0 : index
    %177 = vector.load %arg4[%c0_33, %c0_34] : memref<32x128xf32, #tpu.memory_space<vmem>>, vector<32x128xf32>
    %c0_35 = arith.constant 0 : index
    %c0_36 = arith.constant 0 : index
    %178 = vector.load %arg5[%c0_35, %c0_36] : memref<32x128xf32, #tpu.memory_space<vmem>>, vector<32x128xf32>
    %c0_37 = arith.constant 0 : index
    %c0_38 = arith.constant 0 : index
    %179 = vector.load %arg6[%c0_37, %c0_38] : memref<1x128xf32, #tpu.memory_space<vmem>>, vector<1x128xf32>
    %cst_39 = arith.constant dense<0.000000e+00> : vector<2x128xf32>
    %180 = tpu.matmul %41, %177, %cst_39 {dimension_numbers = #tpu.dot_dimension_numbers<[1], [0], [0], [1], [0, 0, 1, 1], [], []>} : vector<2x32xf32>, vector<32x128xf32>, vector<2x128xf32> -> vector<2x128xf32>
    %181 = vector.broadcast %179 : vector<1x128xf32> to vector<2x128xf32>
    %182 = arith.addf %180, %181 : vector<2x128xf32>
    %cst_40 = arith.constant dense<0.000000e+00> : vector<2x128xf32>
    %183 = tpu.matmul %68, %177, %cst_40 {dimension_numbers = #tpu.dot_dimension_numbers<[1], [0], [0], [1], [0, 0, 1, 1], [], []>} : vector<2x32xf32>, vector<32x128xf32>, vector<2x128xf32> -> vector<2x128xf32>
    %184 = vector.broadcast %179 : vector<1x128xf32> to vector<2x128xf32>
    %185 = arith.addf %183, %184 : vector<2x128xf32>
    %cst_41 = arith.constant dense<0.000000e+00> : vector<2x128xf32>
    %186 = tpu.matmul %95, %177, %cst_41 {dimension_numbers = #tpu.dot_dimension_numbers<[1], [0], [0], [1], [0, 0, 1, 1], [], []>} : vector<2x32xf32>, vector<32x128xf32>, vector<2x128xf32> -> vector<2x128xf32>
    %187 = vector.broadcast %179 : vector<1x128xf32> to vector<2x128xf32>
    %188 = arith.addf %186, %187 : vector<2x128xf32>
    %cst_42 = arith.constant dense<0.000000e+00> : vector<2x128xf32>
    %189 = tpu.matmul %122, %177, %cst_42 {dimension_numbers = #tpu.dot_dimension_numbers<[1], [0], [0], [1], [0, 0, 1, 1], [], []>} : vector<2x32xf32>, vector<32x128xf32>, vector<2x128xf32> -> vector<2x128xf32>
    %190 = vector.broadcast %179 : vector<1x128xf32> to vector<2x128xf32>
    %191 = arith.addf %189, %190 : vector<2x128xf32>
    %cst_43 = arith.constant dense<0.000000e+00> : vector<2x128xf32>
    %192 = tpu.matmul %149, %177, %cst_43 {dimension_numbers = #tpu.dot_dimension_numbers<[1], [0], [0], [1], [0, 0, 1, 1], [], []>} : vector<2x32xf32>, vector<32x128xf32>, vector<2x128xf32> -> vector<2x128xf32>
    %193 = vector.broadcast %179 : vector<1x128xf32> to vector<2x128xf32>
    %194 = arith.addf %192, %193 : vector<2x128xf32>
    %cst_44 = arith.constant dense<0.000000e+00> : vector<2x128xf32>
    %195 = tpu.matmul %176, %177, %cst_44 {dimension_numbers = #tpu.dot_dimension_numbers<[1], [0], [0], [1], [0, 0, 1, 1], [], []>} : vector<2x32xf32>, vector<32x128xf32>, vector<2x128xf32> -> vector<2x128xf32>
    %196 = vector.broadcast %179 : vector<1x128xf32> to vector<2x128xf32>
    %197 = arith.addf %195, %196 : vector<2x128xf32>
    %cst_45 = arith.constant 0.000000e+00 : f32
    %198 = vector.broadcast %cst_45 : f32 to vector<2x32xf32>
    %cst_46 = arith.constant 0.000000e+00 : f32
    %199 = vector.broadcast %cst_46 : f32 to vector<2x32xf32>
    %cst_47 = arith.constant dense<0.000000e+00> : vector<2x128xf32>
    %200 = tpu.matmul %198, %178, %cst_47 {dimension_numbers = #tpu.dot_dimension_numbers<[1], [0], [0], [1], [0, 0, 1, 1], [], []>} : vector<2x32xf32>, vector<32x128xf32>, vector<2x128xf32> -> vector<2x128xf32>
    %201 = arith.addf %182, %200 : vector<2x128xf32>
    %202 = vector.extract_strided_slice %201 {offsets = [0, 0], sizes = [2, 32], strides = [1, 1]} : vector<2x128xf32> to vector<2x32xf32>
    %203 = arith.negf %202 : vector<2x32xf32>
    %204 = math.exp %203 : vector<2x32xf32>
    %cst_48 = arith.constant 1.000000e+00 : f32
    %205 = vector.broadcast %cst_48 : f32 to vector<2x32xf32>
    %206 = arith.addf %205, %204 : vector<2x32xf32>
    %207 = arith.divf %205, %206 : vector<2x32xf32>
    %208 = vector.extract_strided_slice %201 {offsets = [0, 32], sizes = [2, 32], strides = [1, 1]} : vector<2x128xf32> to vector<2x32xf32>
    %209 = arith.negf %208 : vector<2x32xf32>
    %210 = math.exp %209 : vector<2x32xf32>
    %cst_49 = arith.constant 1.000000e+00 : f32
    %211 = vector.broadcast %cst_49 : f32 to vector<2x32xf32>
    %212 = arith.addf %211, %210 : vector<2x32xf32>
    %213 = arith.divf %211, %212 : vector<2x32xf32>
    %214 = vector.extract_strided_slice %201 {offsets = [0, 64], sizes = [2, 32], strides = [1, 1]} : vector<2x128xf32> to vector<2x32xf32>
    %215 = math.tanh %214 : vector<2x32xf32>
    %216 = vector.extract_strided_slice %201 {offsets = [0, 96], sizes = [2, 32], strides = [1, 1]} : vector<2x128xf32> to vector<2x32xf32>
    %217 = arith.negf %216 : vector<2x32xf32>
    %218 = math.exp %217 : vector<2x32xf32>
    %cst_50 = arith.constant 1.000000e+00 : f32
    %219 = vector.broadcast %cst_50 : f32 to vector<2x32xf32>
    %220 = arith.addf %219, %218 : vector<2x32xf32>
    %221 = arith.divf %219, %220 : vector<2x32xf32>
    %222 = arith.mulf %213, %199 : vector<2x32xf32>
    %223 = arith.mulf %207, %215 : vector<2x32xf32>
    %224 = arith.addf %222, %223 : vector<2x32xf32>
    %225 = math.tanh %224 : vector<2x32xf32>
    %226 = arith.mulf %221, %225 : vector<2x32xf32>
    %cst_51 = arith.constant dense<0.000000e+00> : vector<2x128xf32>
    %227 = tpu.matmul %226, %178, %cst_51 {dimension_numbers = #tpu.dot_dimension_numbers<[1], [0], [0], [1], [0, 0, 1, 1], [], []>} : vector<2x32xf32>, vector<32x128xf32>, vector<2x128xf32> -> vector<2x128xf32>
    %228 = arith.addf %185, %227 : vector<2x128xf32>
    %229 = vector.extract_strided_slice %228 {offsets = [0, 0], sizes = [2, 32], strides = [1, 1]} : vector<2x128xf32> to vector<2x32xf32>
    %230 = arith.negf %229 : vector<2x32xf32>
    %231 = math.exp %230 : vector<2x32xf32>
    %cst_52 = arith.constant 1.000000e+00 : f32
    %232 = vector.broadcast %cst_52 : f32 to vector<2x32xf32>
    %233 = arith.addf %232, %231 : vector<2x32xf32>
    %234 = arith.divf %232, %233 : vector<2x32xf32>
    %235 = vector.extract_strided_slice %228 {offsets = [0, 32], sizes = [2, 32], strides = [1, 1]} : vector<2x128xf32> to vector<2x32xf32>
    %236 = arith.negf %235 : vector<2x32xf32>
    %237 = math.exp %236 : vector<2x32xf32>
    %cst_53 = arith.constant 1.000000e+00 : f32
    %238 = vector.broadcast %cst_53 : f32 to vector<2x32xf32>
    %239 = arith.addf %238, %237 : vector<2x32xf32>
    %240 = arith.divf %238, %239 : vector<2x32xf32>
    %241 = vector.extract_strided_slice %228 {offsets = [0, 64], sizes = [2, 32], strides = [1, 1]} : vector<2x128xf32> to vector<2x32xf32>
    %242 = math.tanh %241 : vector<2x32xf32>
    %243 = vector.extract_strided_slice %228 {offsets = [0, 96], sizes = [2, 32], strides = [1, 1]} : vector<2x128xf32> to vector<2x32xf32>
    %244 = arith.negf %243 : vector<2x32xf32>
    %245 = math.exp %244 : vector<2x32xf32>
    %cst_54 = arith.constant 1.000000e+00 : f32
    %246 = vector.broadcast %cst_54 : f32 to vector<2x32xf32>
    %247 = arith.addf %246, %245 : vector<2x32xf32>
    %248 = arith.divf %246, %247 : vector<2x32xf32>
    %249 = arith.mulf %240, %224 : vector<2x32xf32>
    %250 = arith.mulf %234, %242 : vector<2x32xf32>
    %251 = arith.addf %249, %250 : vector<2x32xf32>
    %252 = math.tanh %251 : vector<2x32xf32>
    %253 = arith.mulf %248, %252 : vector<2x32xf32>
    %cst_55 = arith.constant dense<0.000000e+00> : vector<2x128xf32>
    %254 = tpu.matmul %253, %178, %cst_55 {dimension_numbers = #tpu.dot_dimension_numbers<[1], [0], [0], [1], [0, 0, 1, 1], [], []>} : vector<2x32xf32>, vector<32x128xf32>, vector<2x128xf32> -> vector<2x128xf32>
    %255 = arith.addf %188, %254 : vector<2x128xf32>
    %256 = vector.extract_strided_slice %255 {offsets = [0, 0], sizes = [2, 32], strides = [1, 1]} : vector<2x128xf32> to vector<2x32xf32>
    %257 = arith.negf %256 : vector<2x32xf32>
    %258 = math.exp %257 : vector<2x32xf32>
    %cst_56 = arith.constant 1.000000e+00 : f32
    %259 = vector.broadcast %cst_56 : f32 to vector<2x32xf32>
    %260 = arith.addf %259, %258 : vector<2x32xf32>
    %261 = arith.divf %259, %260 : vector<2x32xf32>
    %262 = vector.extract_strided_slice %255 {offsets = [0, 32], sizes = [2, 32], strides = [1, 1]} : vector<2x128xf32> to vector<2x32xf32>
    %263 = arith.negf %262 : vector<2x32xf32>
    %264 = math.exp %263 : vector<2x32xf32>
    %cst_57 = arith.constant 1.000000e+00 : f32
    %265 = vector.broadcast %cst_57 : f32 to vector<2x32xf32>
    %266 = arith.addf %265, %264 : vector<2x32xf32>
    %267 = arith.divf %265, %266 : vector<2x32xf32>
    %268 = vector.extract_strided_slice %255 {offsets = [0, 64], sizes = [2, 32], strides = [1, 1]} : vector<2x128xf32> to vector<2x32xf32>
    %269 = math.tanh %268 : vector<2x32xf32>
    %270 = vector.extract_strided_slice %255 {offsets = [0, 96], sizes = [2, 32], strides = [1, 1]} : vector<2x128xf32> to vector<2x32xf32>
    %271 = arith.negf %270 : vector<2x32xf32>
    %272 = math.exp %271 : vector<2x32xf32>
    %cst_58 = arith.constant 1.000000e+00 : f32
    %273 = vector.broadcast %cst_58 : f32 to vector<2x32xf32>
    %274 = arith.addf %273, %272 : vector<2x32xf32>
    %275 = arith.divf %273, %274 : vector<2x32xf32>
    %276 = arith.mulf %267, %251 : vector<2x32xf32>
    %277 = arith.mulf %261, %269 : vector<2x32xf32>
    %278 = arith.addf %276, %277 : vector<2x32xf32>
    %279 = math.tanh %278 : vector<2x32xf32>
    %280 = arith.mulf %275, %279 : vector<2x32xf32>
    %cst_59 = arith.constant dense<0.000000e+00> : vector<2x128xf32>
    %281 = tpu.matmul %280, %178, %cst_59 {dimension_numbers = #tpu.dot_dimension_numbers<[1], [0], [0], [1], [0, 0, 1, 1], [], []>} : vector<2x32xf32>, vector<32x128xf32>, vector<2x128xf32> -> vector<2x128xf32>
    %282 = arith.addf %191, %281 : vector<2x128xf32>
    %283 = vector.extract_strided_slice %282 {offsets = [0, 0], sizes = [2, 32], strides = [1, 1]} : vector<2x128xf32> to vector<2x32xf32>
    %284 = arith.negf %283 : vector<2x32xf32>
    %285 = math.exp %284 : vector<2x32xf32>
    %cst_60 = arith.constant 1.000000e+00 : f32
    %286 = vector.broadcast %cst_60 : f32 to vector<2x32xf32>
    %287 = arith.addf %286, %285 : vector<2x32xf32>
    %288 = arith.divf %286, %287 : vector<2x32xf32>
    %289 = vector.extract_strided_slice %282 {offsets = [0, 32], sizes = [2, 32], strides = [1, 1]} : vector<2x128xf32> to vector<2x32xf32>
    %290 = arith.negf %289 : vector<2x32xf32>
    %291 = math.exp %290 : vector<2x32xf32>
    %cst_61 = arith.constant 1.000000e+00 : f32
    %292 = vector.broadcast %cst_61 : f32 to vector<2x32xf32>
    %293 = arith.addf %292, %291 : vector<2x32xf32>
    %294 = arith.divf %292, %293 : vector<2x32xf32>
    %295 = vector.extract_strided_slice %282 {offsets = [0, 64], sizes = [2, 32], strides = [1, 1]} : vector<2x128xf32> to vector<2x32xf32>
    %296 = math.tanh %295 : vector<2x32xf32>
    %297 = vector.extract_strided_slice %282 {offsets = [0, 96], sizes = [2, 32], strides = [1, 1]} : vector<2x128xf32> to vector<2x32xf32>
    %298 = arith.negf %297 : vector<2x32xf32>
    %299 = math.exp %298 : vector<2x32xf32>
    %cst_62 = arith.constant 1.000000e+00 : f32
    %300 = vector.broadcast %cst_62 : f32 to vector<2x32xf32>
    %301 = arith.addf %300, %299 : vector<2x32xf32>
    %302 = arith.divf %300, %301 : vector<2x32xf32>
    %303 = arith.mulf %294, %278 : vector<2x32xf32>
    %304 = arith.mulf %288, %296 : vector<2x32xf32>
    %305 = arith.addf %303, %304 : vector<2x32xf32>
    %306 = math.tanh %305 : vector<2x32xf32>
    %307 = arith.mulf %302, %306 : vector<2x32xf32>
    %cst_63 = arith.constant dense<0.000000e+00> : vector<2x128xf32>
    %308 = tpu.matmul %307, %178, %cst_63 {dimension_numbers = #tpu.dot_dimension_numbers<[1], [0], [0], [1], [0, 0, 1, 1], [], []>} : vector<2x32xf32>, vector<32x128xf32>, vector<2x128xf32> -> vector<2x128xf32>
    %309 = arith.addf %194, %308 : vector<2x128xf32>
    %310 = vector.extract_strided_slice %309 {offsets = [0, 0], sizes = [2, 32], strides = [1, 1]} : vector<2x128xf32> to vector<2x32xf32>
    %311 = arith.negf %310 : vector<2x32xf32>
    %312 = math.exp %311 : vector<2x32xf32>
    %cst_64 = arith.constant 1.000000e+00 : f32
    %313 = vector.broadcast %cst_64 : f32 to vector<2x32xf32>
    %314 = arith.addf %313, %312 : vector<2x32xf32>
    %315 = arith.divf %313, %314 : vector<2x32xf32>
    %316 = vector.extract_strided_slice %309 {offsets = [0, 32], sizes = [2, 32], strides = [1, 1]} : vector<2x128xf32> to vector<2x32xf32>
    %317 = arith.negf %316 : vector<2x32xf32>
    %318 = math.exp %317 : vector<2x32xf32>
    %cst_65 = arith.constant 1.000000e+00 : f32
    %319 = vector.broadcast %cst_65 : f32 to vector<2x32xf32>
    %320 = arith.addf %319, %318 : vector<2x32xf32>
    %321 = arith.divf %319, %320 : vector<2x32xf32>
    %322 = vector.extract_strided_slice %309 {offsets = [0, 64], sizes = [2, 32], strides = [1, 1]} : vector<2x128xf32> to vector<2x32xf32>
    %323 = math.tanh %322 : vector<2x32xf32>
    %324 = vector.extract_strided_slice %309 {offsets = [0, 96], sizes = [2, 32], strides = [1, 1]} : vector<2x128xf32> to vector<2x32xf32>
    %325 = arith.negf %324 : vector<2x32xf32>
    %326 = math.exp %325 : vector<2x32xf32>
    %cst_66 = arith.constant 1.000000e+00 : f32
    %327 = vector.broadcast %cst_66 : f32 to vector<2x32xf32>
    %328 = arith.addf %327, %326 : vector<2x32xf32>
    %329 = arith.divf %327, %328 : vector<2x32xf32>
    %330 = arith.mulf %321, %305 : vector<2x32xf32>
    %331 = arith.mulf %315, %323 : vector<2x32xf32>
    %332 = arith.addf %330, %331 : vector<2x32xf32>
    %333 = math.tanh %332 : vector<2x32xf32>
    %334 = arith.mulf %329, %333 : vector<2x32xf32>
    %cst_67 = arith.constant dense<0.000000e+00> : vector<2x128xf32>
    %335 = tpu.matmul %334, %178, %cst_67 {dimension_numbers = #tpu.dot_dimension_numbers<[1], [0], [0], [1], [0, 0, 1, 1], [], []>} : vector<2x32xf32>, vector<32x128xf32>, vector<2x128xf32> -> vector<2x128xf32>
    %336 = arith.addf %197, %335 : vector<2x128xf32>
    %337 = vector.extract_strided_slice %336 {offsets = [0, 0], sizes = [2, 32], strides = [1, 1]} : vector<2x128xf32> to vector<2x32xf32>
    %338 = arith.negf %337 : vector<2x32xf32>
    %339 = math.exp %338 : vector<2x32xf32>
    %cst_68 = arith.constant 1.000000e+00 : f32
    %340 = vector.broadcast %cst_68 : f32 to vector<2x32xf32>
    %341 = arith.addf %340, %339 : vector<2x32xf32>
    %342 = arith.divf %340, %341 : vector<2x32xf32>
    %343 = vector.extract_strided_slice %336 {offsets = [0, 32], sizes = [2, 32], strides = [1, 1]} : vector<2x128xf32> to vector<2x32xf32>
    %344 = arith.negf %343 : vector<2x32xf32>
    %345 = math.exp %344 : vector<2x32xf32>
    %cst_69 = arith.constant 1.000000e+00 : f32
    %346 = vector.broadcast %cst_69 : f32 to vector<2x32xf32>
    %347 = arith.addf %346, %345 : vector<2x32xf32>
    %348 = arith.divf %346, %347 : vector<2x32xf32>
    %349 = vector.extract_strided_slice %336 {offsets = [0, 64], sizes = [2, 32], strides = [1, 1]} : vector<2x128xf32> to vector<2x32xf32>
    %350 = math.tanh %349 : vector<2x32xf32>
    %351 = vector.extract_strided_slice %336 {offsets = [0, 96], sizes = [2, 32], strides = [1, 1]} : vector<2x128xf32> to vector<2x32xf32>
    %352 = arith.negf %351 : vector<2x32xf32>
    %353 = math.exp %352 : vector<2x32xf32>
    %cst_70 = arith.constant 1.000000e+00 : f32
    %354 = vector.broadcast %cst_70 : f32 to vector<2x32xf32>
    %355 = arith.addf %354, %353 : vector<2x32xf32>
    %356 = arith.divf %354, %355 : vector<2x32xf32>
    %357 = arith.mulf %348, %332 : vector<2x32xf32>
    %358 = arith.mulf %342, %350 : vector<2x32xf32>
    %359 = arith.addf %357, %358 : vector<2x32xf32>
    %360 = math.tanh %359 : vector<2x32xf32>
    %361 = arith.mulf %356, %360 : vector<2x32xf32>
    %362 = vector.extract_strided_slice %361 {offsets = [0, 0], sizes = [1, 32], strides = [1, 1]} : vector<2x32xf32> to vector<1x32xf32>
    %c0_71 = arith.constant 0 : index
    %c0_72 = arith.constant 0 : index
    %363 = vector.load %arg7[%c0_71, %c0_72] : memref<32x10xf32, #tpu.memory_space<vmem>>, vector<32x10xf32>
    %cst_73 = arith.constant dense<0.000000e+00> : vector<1x10xf32>
    %364 = tpu.matmul %362, %363, %cst_73 {dimension_numbers = #tpu.dot_dimension_numbers<[1], [0], [0], [1], [0, 0, 1, 1], [], []>} : vector<1x32xf32>, vector<32x10xf32>, vector<1x10xf32> -> vector<1x10xf32>
    %c0_74 = arith.constant 0 : index
    %c0_75 = arith.constant 0 : index
    %365 = vector.load %arg8[%c0_74, %c0_75] : memref<1x10xf32, #tpu.memory_space<vmem>>, vector<1x10xf32>
    %366 = arith.addf %364, %365 : vector<1x10xf32>
    %c0_76 = arith.constant 0 : index
    %c0_77 = arith.constant 0 : index
    %367 = vector.load %arg9[%c0_76, %c0_77] : memref<1x10xf32, #tpu.memory_space<vmem>>, vector<1x10xf32>
    tpu.vector_store %arg9[%c0_76, %c0_77], %366 {strides = array<i32>} : memref<1x10xf32, #tpu.memory_space<vmem>>, vector<1x10xf32>,
    return
  }
}

</mosaic_0001>

<llo_original>
// kernel: lstm_network_forward.1
$region0: #{lstm_network_forward.1}
  #allocation0 [shape = 'u32[]', space=smem, size = 0x4, offset = 0x4, fixed_abs, tag = 'smem constant byte address 0x4 - core index']
  #allocation1 [shape = 'u32[72,128]{1,0:T(1,128)}', space=vmem, size = 0x9000, scoped, tag = 'internal scratch']
  %s0 = inlined_call_operand.vmem [shape: f32[12,16], index: 0, kind: input, shape index: {}]
  %s1 = inlined_call_operand.vmem [shape: f32[16,128], index: 1, kind: input, shape index: {}]
  %s2 = inlined_call_operand.vmem [shape: f32[32,128], index: 2, kind: input, shape index: {}]
  %s3 = inlined_call_operand.vmem [shape: f32[1,128], index: 3, kind: input, shape index: {}]
  %s4 = inlined_call_operand.vmem [shape: f32[32,128], index: 4, kind: input, shape index: {}]
  %s5 = inlined_call_operand.vmem [shape: f32[32,128], index: 5, kind: input, shape index: {}]
  %s6 = inlined_call_operand.vmem [shape: f32[1,128], index: 6, kind: input, shape index: {}]
  %s7 = inlined_call_operand.vmem [shape: f32[32,10], index: 7, kind: input, shape index: {}]
  %s8 = inlined_call_operand.vmem [shape: f32[1,10], index: 8, kind: input, shape index: {}]
  %s9 = inlined_call_operand.hbm [shape: f32[1,10], index: 9, kind: output, shape index: {}]
  %s10 = sld [smem:[#allocation0]]
  $region46: #{lstm_network_forward.1} parent=0
    _
  %s12 = ssub.s32 1, %s10
  %s13 = scalar_select 0, %s12, %s10
  $region1: #{lstm_network_forward.1} parent=0
    #allocation2 [shape = 'u8[512]{0}', space=vmem, size = 0x400, scoped, tag = 'output window, operand 0, single buffered']
    #allocation3 [shape = 's32[1]{0}', space=sflag, size = 0x4, scoped, tag = 'scoped memory for lstm_network_forward.1']
    %14 = vsyncpa [#allocation3], 0
    // Predicated region
    $region2: #{lstm_network_forward.1} parent=1 // pred_check
      _
    $region3: #{lstm_network_forward.1} parent=1 // pred_check_branch
      %16 = sbr.rel (0) target = $region5
    $region4: #{lstm_network_forward.1} parent=1 // pred_region
      _
    $region5: #{lstm_network_forward.1} parent=1 // pred_fallthru
      _
    // Predicated region
    $region6: #{lstm_network_forward.1} parent=1 // pred_check
      _
    $region7: #{lstm_network_forward.1} parent=1 // pred_check_branch
      %18 = sbr.rel (0) target = $region9
    $region8: #{lstm_network_forward.1} parent=1 // pred_region
      _
    $region9: #{lstm_network_forward.1} parent=1 // pred_fallthru
      _
    // Predicated region
    $region10: #{lstm_network_forward.1} parent=1 // pred_check
      _
    $region11: #{lstm_network_forward.1} parent=1 // pred_check_branch
      %20 = sbr.rel (0) target = $region13
    $region12: #{lstm_network_forward.1} parent=1 // pred_region
      _
    $region13: #{lstm_network_forward.1} parent=1 // pred_fallthru
      _
    // Predicated region
    $region14: #{lstm_network_forward.1} parent=1 // pred_check
      _
    $region15: #{lstm_network_forward.1} parent=1 // pred_check_branch
      %22 = sbr.rel (0) target = $region17
    $region16: #{lstm_network_forward.1} parent=1 // pred_region
      _
    $region17: #{lstm_network_forward.1} parent=1 // pred_fallthru
      _
    // Predicated region
    $region18: #{lstm_network_forward.1} parent=1 // pred_check
      _
    $region19: #{lstm_network_forward.1} parent=1 // pred_check_branch
      %24 = sbr.rel (0) target = $region21
    $region20: #{lstm_network_forward.1} parent=1 // pred_region
      _
    $region21: #{lstm_network_forward.1} parent=1 // pred_fallthru
      _
    // Predicated region
    $region22: #{lstm_network_forward.1} parent=1 // pred_check
      _
    $region23: #{lstm_network_forward.1} parent=1 // pred_check_branch
      %26 = sbr.rel (0) target = $region25
    $region24: #{lstm_network_forward.1} parent=1 // pred_region
      _
    $region25: #{lstm_network_forward.1} parent=1 // pred_fallthru
      _
    // Predicated region
    $region26: #{lstm_network_forward.1} parent=1 // pred_check
      _
    $region27: #{lstm_network_forward.1} parent=1 // pred_check_branch
      %28 = sbr.rel (0) target = $region29
    $region28: #{lstm_network_forward.1} parent=1 // pred_region
      _
    $region29: #{lstm_network_forward.1} parent=1 // pred_fallthru
      _
    // Predicated region
    $region30: #{lstm_network_forward.1} parent=1 // pred_check
      _
    $region31: #{lstm_network_forward.1} parent=1 // pred_check_branch
      %30 = sbr.rel (0) target = $region33
    $region32: #{lstm_network_forward.1} parent=1 // pred_region
      _
    $region33: #{lstm_network_forward.1} parent=1 // pred_fallthru
      _
    // Predicated region
    $region34: #{lstm_network_forward.1} parent=1 // pred_check
      _
    $region35: #{lstm_network_forward.1} parent=1 // pred_check_branch
      %32 = sbr.rel (0) target = $region37
    $region36: #{lstm_network_forward.1} parent=1 // pred_region
      _
    $region37: #{lstm_network_forward.1} parent=1 // pred_fallthru
      _
    %v33 = vld [vmem:[%s1] sm:$0xff]
    %v34 = vld [vmem:[%s1 + $0x8] sm:$0xff]
    %v35 = vld [vmem:[%s2] sm:$0xff]
    %v36 = vld [vmem:[%s2 + $0x8] sm:$0xff]
    %v37 = vld [vmem:[%s2 + $0x10] sm:$0xff]
    %v38 = vld [vmem:[%s2 + $0x18] sm:$0xff]
    %v39 = vld [vmem:[%s3] sm:$0x1]
    %v40 = vld [vmem:[%s0] sm:$0xff]
    %v41 = vld [vmem:[%s0 + $0x8] sm:$0xf]
    %v43 = vperm.slane %v39, 0
    %vm45 = vcmask 130048
    %v47 = vsel %vm45, %v40, 0
    %v50 = vsel %vm45, %v41, 0
    %52 = vmatpush.msra.mxu0 0.0
    %53 = vmatpush.msra.mxu0 0.0
    %54 = vmatpush.msra.mxu0 0.0
    %55 = vmatpush.msra.mxu0 0.0
    %56 = vmatpush.msra.mxu0 0.0
    %57 = vmatpush.msra.mxu0 0.0
    %58 = vmatpush.msra.mxu0 0.0
    %59 = vmatpush.msra.mxu0 0.0
    %60 = vmatpush.msra.mxu0 0.0
    %61 = vmatpush.msra.mxu0 0.0
    %62 = vmatpush.msra.mxu0 0.0
    %63 = vmatpush.msra.mxu0 0.0
    %64 = vmatpush.msra.mxu0 0.0
    %65 = vmatpush.msra.mxu0 0.0
    %66 = vmatpush.msra.mxu0 %v34
    %67 = vmatpush.msra.mxu0 %v33
    %68 = vmatmul.f32.gmra.mxu0 %v47
    %v69 = vpop.f32.mrf.mxu0
    %v70 = vadd.f32 %v43, %v69
    %71 = vmatmul.f32.gmra.mxu0 %v50
    %v72 = vpop.f32.mrf.mxu0
    %v73 = vadd.f32 %v43, %v72
    %74 = vdwg.mxu0
    %vm75 = vcmask 261120
    %v77 = vsel %vm75, 0.0, 0
    %79 = vmatpush.msra.mxu0 0.0
    %80 = vmatpush.msra.mxu0 0.0
    %81 = vmatpush.msra.mxu0 0.0
    %82 = vmatpush.msra.mxu0 0.0
    %83 = vmatpush.msra.mxu0 0.0
    %84 = vmatpush.msra.mxu0 0.0
    %85 = vmatpush.msra.mxu0 0.0
    %86 = vmatpush.msra.mxu0 0.0
    %87 = vmatpush.msra.mxu0 0.0
    %88 = vmatpush.msra.mxu0 0.0
    %89 = vmatpush.msra.mxu0 0.0
    %90 = vmatpush.msra.mxu0 0.0
    %91 = vmatpush.msra.mxu0 %v38
    %92 = vmatpush.msra.mxu0 %v37
    %93 = vmatpush.msra.mxu0 %v36
    %94 = vmatpush.msra.mxu0 %v35
    %95 = vmatmul.f32.gmra.mxu0 %v77
    %v96 = vpop.f32.mrf.mxu0
    %v97 = vadd.f32 0.0, %v96
    %98 = vdwg.mxu0
    %v99 = vadd.f32 %v70, %v97
    %v100 = vxor.u32 %v99, 2147483648
    %v101 = vmul.f32 %v100, 1.442695
    %v102 = vpow.pop %v101
    %v103 = vadd.f32 %v102, 1.0
    %v104 = vrcp.pop %v103
    %v105 = vmul.f32 %v103, %v104
    %v106 = vsub.f32 1.0, %v105
    %v107 = vmul.f32 %v104, %v106
    %v108 = vadd.f32 %v104, %v107
    %vm109 = vweird.f32 %v103
    %vm110 = vweird.f32 %v104
    %vm111 = vmor %vm109, %vm110
    %v112 = vsel %vm111, %v104, %v108
    %v113 = vand.u32 2147483647, %v103
    %vm114 = vcmp.eq.f32.partialorder %v113, 8.507059e+37
    %v115 = vand.u32 %v103, 2147483648
    %v116 = vor.u32 1.1754944e-38, %v115
    %v117 = vsel %vm114, %v116, %v112
    %v118 = vmul.f32 1.0, %v117
    %v119 = vtanh.pop %v99
    %v120 = vmul.f32 %v118, 0.0
    %122 = vrot.lane.b32.xlu0 %v119, 64
    %v123 = vpop.permute.xlu0 %122
    %v125 = vmul.f32 %v118, %v123
    %127 = vrot.lane.b32.xlu0 %v125, 32
    %v128 = vpop.permute.xlu0 %127
    %v130 = vadd.f32 %v120, %v128
    %v131 = vtanh.pop %v130
    %133 = vrot.lane.b32.xlu0 %v131, 64
    %v134 = vpop.permute.xlu0 %133
    %v136 = vmul.f32 %v118, %v134
    %138 = vrot.lane.b32.xlu0 %v136, 32
    %v139 = vpop.permute.xlu0 %138
    %v140 = vsel %vm75, %v139, 0
    %142 = vmatpush.msra.mxu0 0.0
    %143 = vmatpush.msra.mxu0 0.0
    %144 = vmatpush.msra.mxu0 0.0
    %145 = vmatpush.msra.mxu0 0.0
    %146 = vmatpush.msra.mxu0 0.0
    %147 = vmatpush.msra.mxu0 0.0
    %148 = vmatpush.msra.mxu0 0.0
    %149 = vmatpush.msra.mxu0 0.0
    %150 = vmatpush.msra.mxu0 0.0
    %151 = vmatpush.msra.mxu0 0.0
    %152 = vmatpush.msra.mxu0 0.0
    %153 = vmatpush.msra.mxu0 0.0
    %154 = vmatpush.msra.mxu0 %v38
    %155 = vmatpush.msra.mxu0 %v37
    %156 = vmatpush.msra.mxu0 %v36
    %157 = vmatpush.msra.mxu0 %v35
    %158 = vmatmul.f32.gmra.mxu0 %v140
    %v159 = vpop.f32.mrf.mxu0
    %v160 = vadd.f32 0.0, %v159
    %161 = vdwg.mxu0
    %v163 = vrot.slane %v160, 6
    %v165 = vadd.f32 %v70, %v163
    %v166 = vxor.u32 %v165, 2147483648
    %v167 = vmul.f32 %v166, 1.442695
    %v168 = vpow.pop %v167
    %v169 = vadd.f32 %v168, 1.0
    %v170 = vrcp.pop %v169
    %v171 = vmul.f32 %v169, %v170
    %v172 = vsub.f32 1.0, %v171
    %v173 = vmul.f32 %v170, %v172
    %v174 = vadd.f32 %v170, %v173
    %vm175 = vweird.f32 %v169
    %vm176 = vweird.f32 %v170
    %vm177 = vmor %vm175, %vm176
    %v178 = vsel %vm177, %v170, %v174
    %v179 = vand.u32 2147483647, %v169
    %vm180 = vcmp.eq.f32.partialorder %v179, 8.507059e+37
    %v181 = vand.u32 %v169, 2147483648
    %v182 = vor.u32 1.1754944e-38, %v181
    %v183 = vsel %vm180, %v182, %v178
    %v184 = vmul.f32 1.0, %v183
    %v185 = vtanh.pop %v165
    %v187 = vrot.slane %v130, 6
    %v189 = vmul.f32 %v184, %v187
    %191 = vrot.lane.b32.xlu0 %v185, 64
    %v192 = vpop.permute.xlu0 %191
    %v194 = vmul.f32 %v184, %v192
    %196 = vrot.lane.b32.xlu0 %v194, 32
    %v197 = vpop.permute.xlu0 %196
    %v199 = vadd.f32 %v189, %v197
    %v200 = vtanh.pop %v199
    %202 = vrot.lane.b32.xlu0 %v200, 64
    %v203 = vpop.permute.xlu0 %202
    %v205 = vmul.f32 %v184, %v203
    %v207 = vrot.slane %v205, 2
    %208 = vrot.lane.b32.xlu0 %v207, 32
    %v209 = vpop.permute.xlu0 %208
    %v210 = vsel %vm75, %v209, 0
    %212 = vmatpush.msra.mxu0 0.0
    %213 = vmatpush.msra.mxu0 0.0
    %214 = vmatpush.msra.mxu0 0.0
    %215 = vmatpush.msra.mxu0 0.0
    %216 = vmatpush.msra.mxu0 0.0
    %217 = vmatpush.msra.mxu0 0.0
    %218 = vmatpush.msra.mxu0 0.0
    %219 = vmatpush.msra.mxu0 0.0
    %220 = vmatpush.msra.mxu0 0.0
    %221 = vmatpush.msra.mxu0 0.0
    %222 = vmatpush.msra.mxu0 0.0
    %223 = vmatpush.msra.mxu0 0.0
    %224 = vmatpush.msra.mxu0 %v38
    %225 = vmatpush.msra.mxu0 %v37
    %226 = vmatpush.msra.mxu0 %v36
    %227 = vmatpush.msra.mxu0 %v35
    %228 = vmatmul.f32.gmra.mxu0 %v210
    %v229 = vpop.f32.mrf.mxu0
    %v230 = vadd.f32 0.0, %v229
    %231 = vdwg.mxu0
    %v233 = vrot.slane %v230, 4
    %v235 = vadd.f32 %v70, %v233
    %v236 = vxor.u32 %v235, 2147483648
    %v237 = vmul.f32 %v236, 1.442695
    %v238 = vpow.pop %v237
    %v239 = vadd.f32 %v238, 1.0
    %v240 = vrcp.pop %v239
    %v241 = vmul.f32 %v239, %v240
    %v242 = vsub.f32 1.0, %v241
    %v243 = vmul.f32 %v240, %v242
    %v244 = vadd.f32 %v240, %v243
    %vm245 = vweird.f32 %v239
    %vm246 = vweird.f32 %v240
    %vm247 = vmor %vm245, %vm246
    %v248 = vsel %vm247, %v240, %v244
    %v249 = vand.u32 2147483647, %v239
    %vm250 = vcmp.eq.f32.partialorder %v249, 8.507059e+37
    %v251 = vand.u32 %v239, 2147483648
    %v252 = vor.u32 1.1754944e-38, %v251
    %v253 = vsel %vm250, %v252, %v248
    %v254 = vmul.f32 1.0, %v253
    %v255 = vtanh.pop %v235
    %v257 = vrot.slane %v199, 6
    %v259 = vmul.f32 %v254, %v257
    %261 = vrot.lane.b32.xlu0 %v255, 64
    %v262 = vpop.permute.xlu0 %261
    %v264 = vmul.f32 %v254, %v262
    %266 = vrot.lane.b32.xlu0 %v264, 32
    %v267 = vpop.permute.xlu0 %266
    %v269 = vadd.f32 %v259, %v267
    %v270 = vtanh.pop %v269
    %272 = vrot.lane.b32.xlu0 %v270, 64
    %v273 = vpop.permute.xlu0 %272
    %v275 = vmul.f32 %v254, %v273
    %v277 = vrot.slane %v275, 4
    %278 = vrot.lane.b32.xlu0 %v277, 32
    %v279 = vpop.permute.xlu0 %278
    %v280 = vsel %vm75, %v279, 0
    %282 = vmatpush.msra.mxu0 0.0
    %283 = vmatpush.msra.mxu0 0.0
    %284 = vmatpush.msra.mxu0 0.0
    %285 = vmatpush.msra.mxu0 0.0
    %286 = vmatpush.msra.mxu0 0.0
    %287 = vmatpush.msra.mxu0 0.0
    %288 = vmatpush.msra.mxu0 0.0
    %289 = vmatpush.msra.mxu0 0.0
    %290 = vmatpush.msra.mxu0 0.0
    %291 = vmatpush.msra.mxu0 0.0
    %292 = vmatpush.msra.mxu0 0.0
    %293 = vmatpush.msra.mxu0 0.0
    %294 = vmatpush.msra.mxu0 %v38
    %295 = vmatpush.msra.mxu0 %v37
    %296 = vmatpush.msra.mxu0 %v36
    %297 = vmatpush.msra.mxu0 %v35
    %298 = vmatmul.f32.gmra.mxu0 %v280
    %v299 = vpop.f32.mrf.mxu0
    %v300 = vadd.f32 0.0, %v299
    %301 = vdwg.mxu0
    %v303 = vrot.slane %v300, 2
    %v305 = vadd.f32 %v70, %v303
    %v306 = vxor.u32 %v305, 2147483648
    %v307 = vmul.f32 %v306, 1.442695
    %v308 = vpow.pop %v307
    %v309 = vadd.f32 %v308, 1.0
    %v310 = vrcp.pop %v309
    %v311 = vmul.f32 %v309, %v310
    %v312 = vsub.f32 1.0, %v311
    %v313 = vmul.f32 %v310, %v312
    %v314 = vadd.f32 %v310, %v313
    %vm315 = vweird.f32 %v309
    %vm316 = vweird.f32 %v310
    %vm317 = vmor %vm315, %vm316
    %v318 = vsel %vm317, %v310, %v314
    %v319 = vand.u32 2147483647, %v309
    %vm320 = vcmp.eq.f32.partialorder %v319, 8.507059e+37
    %v321 = vand.u32 %v309, 2147483648
    %v322 = vor.u32 1.1754944e-38, %v321
    %v323 = vsel %vm320, %v322, %v318
    %v324 = vmul.f32 1.0, %v323
    %v325 = vtanh.pop %v305
    %v327 = vrot.slane %v269, 6
    %v329 = vmul.f32 %v324, %v327
    %331 = vrot.lane.b32.xlu0 %v325, 64
    %v332 = vpop.permute.xlu0 %331
    %v334 = vmul.f32 %v324, %v332
    %336 = vrot.lane.b32.xlu0 %v334, 32
    %v337 = vpop.permute.xlu0 %336
    %v339 = vadd.f32 %v329, %v337
    %v340 = vtanh.pop %v339
    %342 = vrot.lane.b32.xlu0 %v340, 64
    %v343 = vpop.permute.xlu0 %342
    %v345 = vmul.f32 %v324, %v343
    %v347 = vrot.slane %v345, 6
    %348 = vrot.lane.b32.xlu0 %v347, 32
    %v349 = vpop.permute.xlu0 %348
    %v350 = vsel %vm75, %v349, 0
    %352 = vmatpush.msra.mxu0 0.0
    %353 = vmatpush.msra.mxu0 0.0
    %354 = vmatpush.msra.mxu0 0.0
    %355 = vmatpush.msra.mxu0 0.0
    %356 = vmatpush.msra.mxu0 0.0
    %357 = vmatpush.msra.mxu0 0.0
    %358 = vmatpush.msra.mxu0 0.0
    %359 = vmatpush.msra.mxu0 0.0
    %360 = vmatpush.msra.mxu0 0.0
    %361 = vmatpush.msra.mxu0 0.0
    %362 = vmatpush.msra.mxu0 0.0
    %363 = vmatpush.msra.mxu0 0.0
    %364 = vmatpush.msra.mxu0 %v38
    %365 = vmatpush.msra.mxu0 %v37
    %366 = vmatpush.msra.mxu0 %v36
    %367 = vmatpush.msra.mxu0 %v35
    %368 = vmatmul.f32.gmra.mxu0 %v350
    %v369 = vpop.f32.mrf.mxu0
    %v370 = vadd.f32 0.0, %v369
    %371 = vdwg.mxu0
    %v372 = vadd.f32 %v73, %v370
    %v373 = vxor.u32 %v372, 2147483648
    %v374 = vmul.f32 %v373, 1.442695
    %v375 = vpow.pop %v374
    %v376 = vadd.f32 %v375, 1.0
    %v377 = vrcp.pop %v376
    %v378 = vmul.f32 %v376, %v377
    %v379 = vsub.f32 1.0, %v378
    %v380 = vmul.f32 %v377, %v379
    %v381 = vadd.f32 %v377, %v380
    %vm382 = vweird.f32 %v376
    %vm383 = vweird.f32 %v377
    %vm384 = vmor %vm382, %vm383
    %v385 = vsel %vm384, %v377, %v381
    %v386 = vand.u32 2147483647, %v376
    %vm387 = vcmp.eq.f32.partialorder %v386, 8.507059e+37
    %v388 = vand.u32 %v376, 2147483648
    %v389 = vor.u32 1.1754944e-38, %v388
    %v390 = vsel %vm387, %v389, %v385
    %v391 = vmul.f32 1.0, %v390
    %v392 = vtanh.pop %v372
    %v394 = vrot.slane %v339, 6
    %v396 = vmul.f32 %v391, %v394
    %398 = vrot.lane.b32.xlu0 %v392, 64
    %v399 = vpop.permute.xlu0 %398
    %v401 = vmul.f32 %v391, %v399
    %403 = vrot.lane.b32.xlu0 %v401, 32
    %v404 = vpop.permute.xlu0 %403
    %v406 = vadd.f32 %v396, %v404
    %v407 = vtanh.pop %v406
    %409 = vrot.lane.b32.xlu0 %v407, 64
    %v410 = vpop.permute.xlu0 %409
    %v412 = vmul.f32 %v391, %v410
    %414 = vrot.lane.b32.xlu0 %v412, 32
    %v415 = vpop.permute.xlu0 %414
    %v416 = vsel %vm75, %v415, 0
    %418 = vmatpush.msra.mxu0 0.0
    %419 = vmatpush.msra.mxu0 0.0
    %420 = vmatpush.msra.mxu0 0.0
    %421 = vmatpush.msra.mxu0 0.0
    %422 = vmatpush.msra.mxu0 0.0
    %423 = vmatpush.msra.mxu0 0.0
    %424 = vmatpush.msra.mxu0 0.0
    %425 = vmatpush.msra.mxu0 0.0
    %426 = vmatpush.msra.mxu0 0.0
    %427 = vmatpush.msra.mxu0 0.0
    %428 = vmatpush.msra.mxu0 0.0
    %429 = vmatpush.msra.mxu0 0.0
    %430 = vmatpush.msra.mxu0 %v38
    %431 = vmatpush.msra.mxu0 %v37
    %432 = vmatpush.msra.mxu0 %v36
    %433 = vmatpush.msra.mxu0 %v35
    %434 = vmatmul.f32.gmra.mxu0 %v416
    %v435 = vpop.f32.mrf.mxu0
    %v436 = vadd.f32 0.0, %v435
    %437 = vdwg.mxu0
    %v439 = vrot.slane %v436, 6
    %v441 = vadd.f32 %v73, %v439
    %v442 = vxor.u32 %v441, 2147483648
    %v443 = vmul.f32 %v442, 1.442695
    %v444 = vpow.pop %v443
    %v445 = vadd.f32 %v444, 1.0
    %v446 = vrcp.pop %v445
    %v447 = vmul.f32 %v445, %v446
    %v448 = vsub.f32 1.0, %v447
    %v449 = vmul.f32 %v446, %v448
    %v450 = vadd.f32 %v446, %v449
    %vm451 = vweird.f32 %v445
    %vm452 = vweird.f32 %v446
    %vm453 = vmor %vm451, %vm452
    %v454 = vsel %vm453, %v446, %v450
    %v455 = vand.u32 2147483647, %v445
    %vm456 = vcmp.eq.f32.partialorder %v455, 8.507059e+37
    %v457 = vand.u32 %v445, 2147483648
    %v458 = vor.u32 1.1754944e-38, %v457
    %v459 = vsel %vm456, %v458, %v454
    %v460 = vmul.f32 1.0, %v459
    %v461 = vtanh.pop %v441
    %v463 = vrot.slane %v406, 6
    %v465 = vmul.f32 %v460, %v463
    %467 = vrot.lane.b32.xlu0 %v461, 64
    %v468 = vpop.permute.xlu0 %467
    %v470 = vmul.f32 %v460, %v468
    %472 = vrot.lane.b32.xlu0 %v470, 32
    %v473 = vpop.permute.xlu0 %472
    %v475 = vadd.f32 %v465, %v473
    %v476 = vtanh.pop %v475
    %478 = vrot.lane.b32.xlu0 %v476, 64
    %v479 = vpop.permute.xlu0 %478
    %v481 = vmul.f32 %v460, %v479
    %v482 = vld [vmem:[%s4] sm:$0xff]
    %v483 = vld [vmem:[%s4 + $0x8] sm:$0xff]
    %v484 = vld [vmem:[%s4 + $0x10] sm:$0xff]
    %v485 = vld [vmem:[%s4 + $0x18] sm:$0xff]
    %v486 = vld [vmem:[%s5] sm:$0xff]
    %v487 = vld [vmem:[%s5 + $0x8] sm:$0xff]
    %v488 = vld [vmem:[%s5 + $0x10] sm:$0xff]
    %v489 = vld [vmem:[%s5 + $0x18] sm:$0xff]
    %v490 = vld [vmem:[%s6] sm:$0x1]
    %v492 = vperm.slane %v490, 0
    %494 = vmatpush.msra.mxu0 0.0
    %495 = vmatpush.msra.mxu0 0.0
    %496 = vmatpush.msra.mxu0 0.0
    %497 = vmatpush.msra.mxu0 0.0
    %498 = vmatpush.msra.mxu0 0.0
    %499 = vmatpush.msra.mxu0 0.0
    %500 = vmatpush.msra.mxu0 0.0
    %501 = vmatpush.msra.mxu0 0.0
    %502 = vmatpush.msra.mxu0 0.0
    %503 = vmatpush.msra.mxu0 0.0
    %504 = vmatpush.msra.mxu0 0.0
    %505 = vmatpush.msra.mxu0 0.0
    %506 = vmatpush.msra.mxu0 %v485
    %507 = vmatpush.msra.mxu0 %v484
    %508 = vmatpush.msra.mxu0 %v483
    %509 = vmatpush.msra.mxu0 %v482
    %510 = vmatmul.f32.gmra.mxu0 %v140
    %v511 = vpop.f32.mrf.mxu0
    %v512 = vadd.f32 %v492, %v511
    %513 = vdwg.mxu0
    %514 = vmatpush.msra.mxu0 0.0
    %515 = vmatpush.msra.mxu0 0.0
    %516 = vmatpush.msra.mxu0 0.0
    %517 = vmatpush.msra.mxu0 0.0
    %518 = vmatpush.msra.mxu0 0.0
    %519 = vmatpush.msra.mxu0 0.0
    %520 = vmatpush.msra.mxu0 0.0
    %521 = vmatpush.msra.mxu0 0.0
    %522 = vmatpush.msra.mxu0 0.0
    %523 = vmatpush.msra.mxu0 0.0
    %524 = vmatpush.msra.mxu0 0.0
    %525 = vmatpush.msra.mxu0 0.0
    %526 = vmatpush.msra.mxu0 %v485
    %527 = vmatpush.msra.mxu0 %v484
    %528 = vmatpush.msra.mxu0 %v483
    %529 = vmatpush.msra.mxu0 %v482
    %530 = vmatmul.f32.gmra.mxu0 %v210
    %v531 = vpop.f32.mrf.mxu0
    %v532 = vadd.f32 %v492, %v531
    %533 = vdwg.mxu0
    %534 = vmatpush.msra.mxu0 0.0
    %535 = vmatpush.msra.mxu0 0.0
    %536 = vmatpush.msra.mxu0 0.0
    %537 = vmatpush.msra.mxu0 0.0
    %538 = vmatpush.msra.mxu0 0.0
    %539 = vmatpush.msra.mxu0 0.0
    %540 = vmatpush.msra.mxu0 0.0
    %541 = vmatpush.msra.mxu0 0.0
    %542 = vmatpush.msra.mxu0 0.0
    %543 = vmatpush.msra.mxu0 0.0
    %544 = vmatpush.msra.mxu0 0.0
    %545 = vmatpush.msra.mxu0 0.0
    %546 = vmatpush.msra.mxu0 %v485
    %547 = vmatpush.msra.mxu0 %v484
    %548 = vmatpush.msra.mxu0 %v483
    %549 = vmatpush.msra.mxu0 %v482
    %550 = vmatmul.f32.gmra.mxu0 %v280
    %v551 = vpop.f32.mrf.mxu0
    %v552 = vadd.f32 %v492, %v551
    %553 = vdwg.mxu0
    %554 = vmatpush.msra.mxu0 0.0
    %555 = vmatpush.msra.mxu0 0.0
    %556 = vmatpush.msra.mxu0 0.0
    %557 = vmatpush.msra.mxu0 0.0
    %558 = vmatpush.msra.mxu0 0.0
    %559 = vmatpush.msra.mxu0 0.0
    %560 = vmatpush.msra.mxu0 0.0
    %561 = vmatpush.msra.mxu0 0.0
    %562 = vmatpush.msra.mxu0 0.0
    %563 = vmatpush.msra.mxu0 0.0
    %564 = vmatpush.msra.mxu0 0.0
    %565 = vmatpush.msra.mxu0 0.0
    %566 = vmatpush.msra.mxu0 %v485
    %567 = vmatpush.msra.mxu0 %v484
    %568 = vmatpush.msra.mxu0 %v483
    %569 = vmatpush.msra.mxu0 %v482
    %570 = vmatmul.f32.gmra.mxu0 %v350
    %v571 = vpop.f32.mrf.mxu0
    %v572 = vadd.f32 %v492, %v571
    %573 = vdwg.mxu0
    %574 = vmatpush.msra.mxu0 0.0
    %575 = vmatpush.msra.mxu0 0.0
    %576 = vmatpush.msra.mxu0 0.0
    %577 = vmatpush.msra.mxu0 0.0
    %578 = vmatpush.msra.mxu0 0.0
    %579 = vmatpush.msra.mxu0 0.0
    %580 = vmatpush.msra.mxu0 0.0
    %581 = vmatpush.msra.mxu0 0.0
    %582 = vmatpush.msra.mxu0 0.0
    %583 = vmatpush.msra.mxu0 0.0
    %584 = vmatpush.msra.mxu0 0.0
    %585 = vmatpush.msra.mxu0 0.0
    %586 = vmatpush.msra.mxu0 %v485
    %587 = vmatpush.msra.mxu0 %v484
    %588 = vmatpush.msra.mxu0 %v483
    %589 = vmatpush.msra.mxu0 %v482
    %590 = vmatmul.f32.gmra.mxu0 %v416
    %v591 = vpop.f32.mrf.mxu0
    %v592 = vadd.f32 %v492, %v591
    %593 = vdwg.mxu0
    %v595 = vrot.slane %v481, 2
    %596 = vrot.lane.b32.xlu0 %v595, 32
    %v597 = vpop.permute.xlu0 %596
    %v598 = vsel %vm75, %v597, 0
    %600 = vmatpush.msra.mxu0 0.0
    %601 = vmatpush.msra.mxu0 0.0
    %602 = vmatpush.msra.mxu0 0.0
    %603 = vmatpush.msra.mxu0 0.0
    %604 = vmatpush.msra.mxu0 0.0
    %605 = vmatpush.msra.mxu0 0.0
    %606 = vmatpush.msra.mxu0 0.0
    %607 = vmatpush.msra.mxu0 0.0
    %608 = vmatpush.msra.mxu0 0.0
    %609 = vmatpush.msra.mxu0 0.0
    %610 = vmatpush.msra.mxu0 0.0
    %611 = vmatpush.msra.mxu0 0.0
    %612 = vmatpush.msra.mxu0 %v485
    %613 = vmatpush.msra.mxu0 %v484
    %614 = vmatpush.msra.mxu0 %v483
    %615 = vmatpush.msra.mxu0 %v482
    %616 = vmatmul.f32.gmra.mxu0 %v598
    %v617 = vpop.f32.mrf.mxu0
    %v618 = vadd.f32 %v492, %v617
    %619 = vdwg.mxu0
    %620 = vmatpush.msra.mxu0 0.0
    %621 = vmatpush.msra.mxu0 0.0
    %622 = vmatpush.msra.mxu0 0.0
    %623 = vmatpush.msra.mxu0 0.0
    %624 = vmatpush.msra.mxu0 0.0
    %625 = vmatpush.msra.mxu0 0.0
    %626 = vmatpush.msra.mxu0 0.0
    %627 = vmatpush.msra.mxu0 0.0
    %628 = vmatpush.msra.mxu0 0.0
    %629 = vmatpush.msra.mxu0 0.0
    %630 = vmatpush.msra.mxu0 0.0
    %631 = vmatpush.msra.mxu0 0.0
    %632 = vmatpush.msra.mxu0 %v489
    %633 = vmatpush.msra.mxu0 %v488
    %634 = vmatpush.msra.mxu0 %v487
    %635 = vmatpush.msra.mxu0 %v486
    %636 = vmatmul.f32.gmra.mxu0 %v77
    %v637 = vpop.f32.mrf.mxu0
    %v638 = vadd.f32 0.0, %v637
    %639 = vdwg.mxu0
    %v640 = vadd.f32 %v512, %v638
    %v641 = vxor.u32 %v640, 2147483648
    %v642 = vmul.f32 %v641, 1.442695
    %v643 = vpow.pop %v642
    %v644 = vadd.f32 %v643, 1.0
    %v645 = vrcp.pop %v644
    %v646 = vmul.f32 %v644, %v645
    %v647 = vsub.f32 1.0, %v646
    %v648 = vmul.f32 %v645, %v647
    %v649 = vadd.f32 %v645, %v648
    %vm650 = vweird.f32 %v644
    %vm651 = vweird.f32 %v645
    %vm652 = vmor %vm650, %vm651
    %v653 = vsel %vm652, %v645, %v649
    %v654 = vand.u32 2147483647, %v644
    %vm655 = vcmp.eq.f32.partialorder %v654, 8.507059e+37
    %v656 = vand.u32 %v644, 2147483648
    %v657 = vor.u32 1.1754944e-38, %v656
    %v658 = vsel %vm655, %v657, %v653
    %v659 = vmul.f32 1.0, %v658
    %v660 = vtanh.pop %v640
    %v661 = vmul.f32 %v659, 0.0
    %663 = vrot.lane.b32.xlu0 %v660, 64
    %v664 = vpop.permute.xlu0 %663
    %v666 = vmul.f32 %v659, %v664
    %668 = vrot.lane.b32.xlu0 %v666, 32
    %v669 = vpop.permute.xlu0 %668
    %v671 = vadd.f32 %v661, %v669
    %v672 = vtanh.pop %v671
    %674 = vrot.lane.b32.xlu0 %v672, 64
    %v675 = vpop.permute.xlu0 %674
    %v677 = vmul.f32 %v659, %v675
    %679 = vrot.lane.b32.xlu0 %v677, 32
    %v680 = vpop.permute.xlu0 %679
    %v681 = vsel %vm75, %v680, 0
    %683 = vmatpush.msra.mxu0 0.0
    %684 = vmatpush.msra.mxu0 0.0
    %685 = vmatpush.msra.mxu0 0.0
    %686 = vmatpush.msra.mxu0 0.0
    %687 = vmatpush.msra.mxu0 0.0
    %688 = vmatpush.msra.mxu0 0.0
    %689 = vmatpush.msra.mxu0 0.0
    %690 = vmatpush.msra.mxu0 0.0
    %691 = vmatpush.msra.mxu0 0.0
    %692 = vmatpush.msra.mxu0 0.0
    %693 = vmatpush.msra.mxu0 0.0
    %694 = vmatpush.msra.mxu0 0.0
    %695 = vmatpush.msra.mxu0 %v489
    %696 = vmatpush.msra.mxu0 %v488
    %697 = vmatpush.msra.mxu0 %v487
    %698 = vmatpush.msra.mxu0 %v486
    %699 = vmatmul.f32.gmra.mxu0 %v681
    %v700 = vpop.f32.mrf.mxu0
    %v701 = vadd.f32 0.0, %v700
    %702 = vdwg.mxu0
    %v703 = vadd.f32 %v532, %v701
    %v704 = vxor.u32 %v703, 2147483648
    %v705 = vmul.f32 %v704, 1.442695
    %v706 = vpow.pop %v705
    %v707 = vadd.f32 %v706, 1.0
    %v708 = vrcp.pop %v707
    %v709 = vmul.f32 %v707, %v708
    %v710 = vsub.f32 1.0, %v709
    %v711 = vmul.f32 %v708, %v710
    %v712 = vadd.f32 %v708, %v711
    %vm713 = vweird.f32 %v707
    %vm714 = vweird.f32 %v708
    %vm715 = vmor %vm713, %vm714
    %v716 = vsel %vm715, %v708, %v712
    %v717 = vand.u32 2147483647, %v707
    %vm718 = vcmp.eq.f32.partialorder %v717, 8.507059e+37
    %v719 = vand.u32 %v707, 2147483648
    %v720 = vor.u32 1.1754944e-38, %v719
    %v721 = vsel %vm718, %v720, %v716
    %v722 = vmul.f32 1.0, %v721
    %v723 = vtanh.pop %v703
    %v724 = vmul.f32 %v722, %v671
    %726 = vrot.lane.b32.xlu0 %v723, 64
    %v727 = vpop.permute.xlu0 %726
    %v729 = vmul.f32 %v722, %v727
    %731 = vrot.lane.b32.xlu0 %v729, 32
    %v732 = vpop.permute.xlu0 %731
    %v734 = vadd.f32 %v724, %v732
    %v735 = vtanh.pop %v734
    %737 = vrot.lane.b32.xlu0 %v735, 64
    %v738 = vpop.permute.xlu0 %737
    %v740 = vmul.f32 %v722, %v738
    %742 = vrot.lane.b32.xlu0 %v740, 32
    %v743 = vpop.permute.xlu0 %742
    %v744 = vsel %vm75, %v743, 0
    %746 = vmatpush.msra.mxu0 0.0
    %747 = vmatpush.msra.mxu0 0.0
    %748 = vmatpush.msra.mxu0 0.0
    %749 = vmatpush.msra.mxu0 0.0
    %750 = vmatpush.msra.mxu0 0.0
    %751 = vmatpush.msra.mxu0 0.0
    %752 = vmatpush.msra.mxu0 0.0
    %753 = vmatpush.msra.mxu0 0.0
    %754 = vmatpush.msra.mxu0 0.0
    %755 = vmatpush.msra.mxu0 0.0
    %756 = vmatpush.msra.mxu0 0.0
    %757 = vmatpush.msra.mxu0 0.0
    %758 = vmatpush.msra.mxu0 %v489
    %759 = vmatpush.msra.mxu0 %v488
    %760 = vmatpush.msra.mxu0 %v487
    %761 = vmatpush.msra.mxu0 %v486
    %762 = vmatmul.f32.gmra.mxu0 %v744
    %v763 = vpop.f32.mrf.mxu0
    %v764 = vadd.f32 0.0, %v763
    %765 = vdwg.mxu0
    %v766 = vadd.f32 %v552, %v764
    %v767 = vxor.u32 %v766, 2147483648
    %v768 = vmul.f32 %v767, 1.442695
    %v769 = vpow.pop %v768
    %v770 = vadd.f32 %v769, 1.0
    %v771 = vrcp.pop %v770
    %v772 = vmul.f32 %v770, %v771
    %v773 = vsub.f32 1.0, %v772
    %v774 = vmul.f32 %v771, %v773
    %v775 = vadd.f32 %v771, %v774
    %vm776 = vweird.f32 %v770
    %vm777 = vweird.f32 %v771
    %vm778 = vmor %vm776, %vm777
    %v779 = vsel %vm778, %v771, %v775
    %v780 = vand.u32 2147483647, %v770
    %vm781 = vcmp.eq.f32.partialorder %v780, 8.507059e+37
    %v782 = vand.u32 %v770, 2147483648
    %v783 = vor.u32 1.1754944e-38, %v782
    %v784 = vsel %vm781, %v783, %v779
    %v785 = vmul.f32 1.0, %v784
    %v786 = vtanh.pop %v766
    %v787 = vmul.f32 %v785, %v734
    %789 = vrot.lane.b32.xlu0 %v786, 64
    %v790 = vpop.permute.xlu0 %789
    %v792 = vmul.f32 %v785, %v790
    %794 = vrot.lane.b32.xlu0 %v792, 32
    %v795 = vpop.permute.xlu0 %794
    %v797 = vadd.f32 %v787, %v795
    %v798 = vtanh.pop %v797
    %800 = vrot.lane.b32.xlu0 %v798, 64
    %v801 = vpop.permute.xlu0 %800
    %v803 = vmul.f32 %v785, %v801
    %805 = vrot.lane.b32.xlu0 %v803, 32
    %v806 = vpop.permute.xlu0 %805
    %v807 = vsel %vm75, %v806, 0
    %809 = vmatpush.msra.mxu0 0.0
    %810 = vmatpush.msra.mxu0 0.0
    %811 = vmatpush.msra.mxu0 0.0
    %812 = vmatpush.msra.mxu0 0.0
    %813 = vmatpush.msra.mxu0 0.0
    %814 = vmatpush.msra.mxu0 0.0
    %815 = vmatpush.msra.mxu0 0.0
    %816 = vmatpush.msra.mxu0 0.0
    %817 = vmatpush.msra.mxu0 0.0
    %818 = vmatpush.msra.mxu0 0.0
    %819 = vmatpush.msra.mxu0 0.0
    %820 = vmatpush.msra.mxu0 0.0
    %821 = vmatpush.msra.mxu0 %v489
    %822 = vmatpush.msra.mxu0 %v488
    %823 = vmatpush.msra.mxu0 %v487
    %824 = vmatpush.msra.mxu0 %v486
    %825 = vmatmul.f32.gmra.mxu0 %v807
    %v826 = vpop.f32.mrf.mxu0
    %v827 = vadd.f32 0.0, %v826
    %828 = vdwg.mxu0
    %v829 = vadd.f32 %v572, %v827
    %v830 = vxor.u32 %v829, 2147483648
    %v831 = vmul.f32 %v830, 1.442695
    %v832 = vpow.pop %v831
    %v833 = vadd.f32 %v832, 1.0
    %v834 = vrcp.pop %v833
    %v835 = vmul.f32 %v833, %v834
    %v836 = vsub.f32 1.0, %v835
    %v837 = vmul.f32 %v834, %v836
    %v838 = vadd.f32 %v834, %v837
    %vm839 = vweird.f32 %v833
    %vm840 = vweird.f32 %v834
    %vm841 = vmor %vm839, %vm840
    %v842 = vsel %vm841, %v834, %v838
    %v843 = vand.u32 2147483647, %v833
    %vm844 = vcmp.eq.f32.partialorder %v843, 8.507059e+37
    %v845 = vand.u32 %v833, 2147483648
    %v846 = vor.u32 1.1754944e-38, %v845
    %v847 = vsel %vm844, %v846, %v842
    %v848 = vmul.f32 1.0, %v847
    %v849 = vtanh.pop %v829
    %v850 = vmul.f32 %v848, %v797
    %852 = vrot.lane.b32.xlu0 %v849, 64
    %v853 = vpop.permute.xlu0 %852
    %v855 = vmul.f32 %v848, %v853
    %857 = vrot.lane.b32.xlu0 %v855, 32
    %v858 = vpop.permute.xlu0 %857
    %v860 = vadd.f32 %v850, %v858
    %v861 = vtanh.pop %v860
    %863 = vrot.lane.b32.xlu0 %v861, 64
    %v864 = vpop.permute.xlu0 %863
    %v866 = vmul.f32 %v848, %v864
    %868 = vrot.lane.b32.xlu0 %v866, 32
    %v869 = vpop.permute.xlu0 %868
    %v870 = vsel %vm75, %v869, 0
    %872 = vmatpush.msra.mxu0 0.0
    %873 = vmatpush.msra.mxu0 0.0
    %874 = vmatpush.msra.mxu0 0.0
    %875 = vmatpush.msra.mxu0 0.0
    %876 = vmatpush.msra.mxu0 0.0
    %877 = vmatpush.msra.mxu0 0.0
    %878 = vmatpush.msra.mxu0 0.0
    %879 = vmatpush.msra.mxu0 0.0
    %880 = vmatpush.msra.mxu0 0.0
    %881 = vmatpush.msra.mxu0 0.0
    %882 = vmatpush.msra.mxu0 0.0
    %883 = vmatpush.msra.mxu0 0.0
    %884 = vmatpush.msra.mxu0 %v489
    %885 = vmatpush.msra.mxu0 %v488
    %886 = vmatpush.msra.mxu0 %v487
    %887 = vmatpush.msra.mxu0 %v486
    %888 = vmatmul.f32.gmra.mxu0 %v870
    %v889 = vpop.f32.mrf.mxu0
    %v890 = vadd.f32 0.0, %v889
    %891 = vdwg.mxu0
    %v892 = vadd.f32 %v592, %v890
    %v893 = vxor.u32 %v892, 2147483648
    %v894 = vmul.f32 %v893, 1.442695
    %v895 = vpow.pop %v894
    %v896 = vadd.f32 %v895, 1.0
    %v897 = vrcp.pop %v896
    %v898 = vmul.f32 %v896, %v897
    %v899 = vsub.f32 1.0, %v898
    %v900 = vmul.f32 %v897, %v899
    %v901 = vadd.f32 %v897, %v900
    %vm902 = vweird.f32 %v896
    %vm903 = vweird.f32 %v897
    %vm904 = vmor %vm902, %vm903
    %v905 = vsel %vm904, %v897, %v901
    %v906 = vand.u32 2147483647, %v896
    %vm907 = vcmp.eq.f32.partialorder %v906, 8.507059e+37
    %v908 = vand.u32 %v896, 2147483648
    %v909 = vor.u32 1.1754944e-38, %v908
    %v910 = vsel %vm907, %v909, %v905
    %v911 = vmul.f32 1.0, %v910
    %v912 = vtanh.pop %v892
    %v913 = vmul.f32 %v911, %v860
    %915 = vrot.lane.b32.xlu0 %v912, 64
    %v916 = vpop.permute.xlu0 %915
    %v918 = vmul.f32 %v911, %v916
    %920 = vrot.lane.b32.xlu0 %v918, 32
    %v921 = vpop.permute.xlu0 %920
    %v923 = vadd.f32 %v913, %v921
    %v924 = vtanh.pop %v923
    %926 = vrot.lane.b32.xlu0 %v924, 64
    %v927 = vpop.permute.xlu0 %926
    %v929 = vmul.f32 %v911, %v927
    %931 = vrot.lane.b32.xlu0 %v929, 32
    %v932 = vpop.permute.xlu0 %931
    %v933 = vsel %vm75, %v932, 0
    %935 = vmatpush.msra.mxu0 0.0
    %936 = vmatpush.msra.mxu0 0.0
    %937 = vmatpush.msra.mxu0 0.0
    %938 = vmatpush.msra.mxu0 0.0
    %939 = vmatpush.msra.mxu0 0.0
    %940 = vmatpush.msra.mxu0 0.0
    %941 = vmatpush.msra.mxu0 0.0
    %942 = vmatpush.msra.mxu0 0.0
    %943 = vmatpush.msra.mxu0 0.0
    %944 = vmatpush.msra.mxu0 0.0
    %945 = vmatpush.msra.mxu0 0.0
    %946 = vmatpush.msra.mxu0 0.0
    %947 = vmatpush.msra.mxu0 %v489
    %948 = vmatpush.msra.mxu0 %v488
    %949 = vmatpush.msra.mxu0 %v487
    %950 = vmatpush.msra.mxu0 %v486
    %951 = vmatmul.f32.gmra.mxu0 %v933
    %v952 = vpop.f32.mrf.mxu0
    %v953 = vadd.f32 0.0, %v952
    %954 = vdwg.mxu0
    %v955 = vadd.f32 %v618, %v953
    %v956 = vxor.u32 %v955, 2147483648
    %v957 = vmul.f32 %v956, 1.442695
    %v958 = vpow.pop %v957
    %v959 = vadd.f32 %v958, 1.0
    %v960 = vrcp.pop %v959
    %v961 = vmul.f32 %v959, %v960
    %v962 = vsub.f32 1.0, %v961
    %v963 = vmul.f32 %v960, %v962
    %v964 = vadd.f32 %v960, %v963
    %vm965 = vweird.f32 %v959
    %vm966 = vweird.f32 %v960
    %vm967 = vmor %vm965, %vm966
    %v968 = vsel %vm967, %v960, %v964
    %v969 = vand.u32 2147483647, %v959
    %vm970 = vcmp.eq.f32.partialorder %v969, 8.507059e+37
    %v971 = vand.u32 %v959, 2147483648
    %v972 = vor.u32 1.1754944e-38, %v971
    %v973 = vsel %vm970, %v972, %v968
    %v974 = vmul.f32 1.0, %v973
    %v975 = vtanh.pop %v955
    %v976 = vmul.f32 %v974, %v923
    %978 = vrot.lane.b32.xlu0 %v975, 64
    %v979 = vpop.permute.xlu0 %978
    %v981 = vmul.f32 %v974, %v979
    %983 = vrot.lane.b32.xlu0 %v981, 32
    %v984 = vpop.permute.xlu0 %983
    %v986 = vadd.f32 %v976, %v984
    %v987 = vtanh.pop %v986
    %989 = vrot.lane.b32.xlu0 %v987, 64
    %v990 = vpop.permute.xlu0 %989
    %v992 = vmul.f32 %v974, %v990
    %v993 = vld [vmem:[%s7] sm:$0xff]
    %v994 = vld [vmem:[%s7 + $0x8] sm:$0xff]
    %v995 = vld [vmem:[%s7 + $0x10] sm:$0xff]
    %v996 = vld [vmem:[%s7 + $0x18] sm:$0xff]
    %v997 = vld [vmem:[%s8] sm:$0x1]
    %999 = vrot.lane.b32.xlu0 %v992, 32
    %v1000 = vpop.permute.xlu0 %999
    %v1001 = vsel %vm75, %v1000, 0
    %1003 = vmatpush.msra.mxu0 0.0
    %1004 = vmatpush.msra.mxu0 0.0
    %1005 = vmatpush.msra.mxu0 0.0
    %1006 = vmatpush.msra.mxu0 0.0
    %1007 = vmatpush.msra.mxu0 0.0
    %1008 = vmatpush.msra.mxu0 0.0
    %1009 = vmatpush.msra.mxu0 0.0
    %1010 = vmatpush.msra.mxu0 0.0
    %1011 = vmatpush.msra.mxu0 0.0
    %1012 = vmatpush.msra.mxu0 0.0
    %1013 = vmatpush.msra.mxu0 0.0
    %1014 = vmatpush.msra.mxu0 0.0
    %1015 = vmatpush.msra.mxu0 %v996
    %1016 = vmatpush.msra.mxu0 %v995
    %1017 = vmatpush.msra.mxu0 %v994
    %1018 = vmatpush.msra.mxu0 %v993
    %1019 = vmatmul.f32.gmra.mxu0 %v1001
    %v1020 = vpop.f32.mrf.mxu0
    %v1021 = vadd.f32 %v997, %v1020
    %1022 = vdwg.mxu0
    %vm1023 = vcmask 73728
    %1024 = vst.msk [vmem:[#allocation2] sm:$0x1] %vm1023, %v1021
    // Predicated region
    $region38: #{lstm_network_forward.1} parent=1 // pred_check
      _
    $region39: #{lstm_network_forward.1} parent=1 // pred_check_branch
      %1026 = sbr.rel (0) target = $region41
    $region40: #{lstm_network_forward.1} parent=1 // pred_region
      %1028 = vsyncadd [#allocation3], 0
      %s1030 = sshll.u32 [#allocation2], 4
      %s1031 = int_to_ptr.vmem [resolvable:$true] %s1030
      %s1032 = sshll.u32 %s9, 4
      %s1033 = int_to_ptr.hbm [resolvable:$true] %s1032
      %1035 = dma.vmem_to_hbm [thread:$0]  %s1031, 16, %s1033, [#allocation3]
    $region41: #{lstm_network_forward.1} parent=1 // pred_fallthru
      _
    // Predicated region
    $region42: #{lstm_network_forward.1} parent=1 // pred_check
      _
    $region43: #{lstm_network_forward.1} parent=1 // pred_check_branch
      %1037 = sbr.rel (0) target = $region45
    $region44: #{lstm_network_forward.1} parent=1 // pred_region
      %1039 = dma.done [#allocation3], 16
    $region45: #{lstm_network_forward.1} parent=1 // pred_fallthru
      _
    %1040 = vsyncpa [#allocation3], 1

</llo_original>
